<compile_context>
chip_gen: v7x
topology: tpu7x:2x2x1
jax: 0.10.0
libtpu: 0.0.40
codegen_flags: <defaults>
</compile_context>

<pallas_src>
import jax
import jax.numpy as jnp
import numpy as np
from jax import lax
from jax.experimental import pallas as pl
from jax.experimental.pallas import tpu as pltpu


# ----------------------------------------------------------------------------
# In-kernel helpers.  Values are NHWC per batch element: H leading (untiled),
# W on sublanes, C on lanes.  Only layout-safe ops are used: leading-dim
# reshape/stack/slice, sublane slices + concatenate, pltpu.roll on sublanes.
# ----------------------------------------------------------------------------
def _upsample2x(x):
    """Nearest 2x upsample: (H2, W2, C) -> (2*H2, 2*W2, C)."""
    h2, w2, c = x.shape
    # Row duplication: leading-dim stack + reshape (last two dims untouched).
    xr = jnp.stack([x, x], axis=1).reshape(2 * h2, w2, c)
    # Column duplication: W is the sublane axis; assemble via single-column
    # slices + one concatenate (stays in VMEM, no HBM round trip).
    cols = [xr[:, w // 2:w // 2 + 1, :] for w in range(2 * w2)]
    return jnp.concatenate(cols, axis=1)


def _maxpool2x(x):
    """2x2 max-pool: (2H, 2W, C) -> (H, W, C)."""
    hh, ww, c = x.shape
    # Row pooling: split the leading dim only, reduce with static indices.
    xr = x.reshape(hh // 2, 2, ww, c)
    rmax = jnp.maximum(xr[:, 0], xr[:, 1])                       # (H, 2W, C)
    # Column pooling: adjacent-pair max via a sublane roll, keep even columns.
    pair = jnp.maximum(rmax, pltpu.roll(rmax, ww - 1, axis=1))
    cols = [pair[:, 2 * w:2 * w + 1, :] for w in range(ww // 2)]
    return jnp.concatenate(cols, axis=1)


# ----------------------------------------------------------------------------
# Fused BiFPN node kernel:
#   BiFPNWeightedAdd (with the 2x resample of each input fused in)
#   -> depthwise 3x3 conv (padding=0) + bias
#   -> depthwise 1x1 conv (padding=1) + bias
# ----------------------------------------------------------------------------
def _make_fused_kernel(modes, H, W, C):
    n_in = len(modes)
    Ho = H - 2

    def kernel(coef_ref, *refs):
        x_refs = refs[:n_in]
        k3_ref, b3_ref, k1_ref, b1_ref, out_ref = refs[n_in:]

        # ---- weighted add (coefficients already relu-normalized, in SMEM) ----
        s = None
        for j, mode in enumerate(modes):
            xj = x_refs[j][0]                       # (h_j, w_j, C)
            if mode == "up":
                xj = _upsample2x(xj)                # fused nearest 2x upsample
            elif mode == "down":
                xj = _maxpool2x(xj)                 # fused 2x2 maxpool
            term = coef_ref[j] * xj                 # scalar * (H, W, C)
            s = term if s is None else s + term

        # ---- depthwise 3x3 conv, padding=0 (VALID), bias b3 folded in ----
        # dh -> leading-dim slice, dw -> sublane roll (wrapped columns land on
        # the border which the 1x1/pad=1 stage overwrites with b1 anyway).
        b3 = b3_ref[0]                              # (C,)
        acc = None
        for dw in range(3):
            shift = (1 - dw) % W
            t = s if shift == 0 else pltpu.roll(s, shift, axis=1)
            for dh in range(3):
                term = t[dh:dh + Ho] * k3_ref[dh, dw]      # (Ho, W, C) * (C,)
                acc = (term + b3) if acc is None else (acc + term)

        # ---- depthwise 1x1 conv with padding=1, bias b1 ----
        # Zero padding of the intermediate => border of the output is b1;
        # interior is k1 * (conv3 + b3) + b1.
        k1 = k1_ref[0]                              # (C,)
        b1 = b1_ref[0]                              # (C,)
        col = lax.broadcasted_iota(jnp.int32, (Ho, W, C), 1)
        col_border = (col == 0) | (col == W - 1)
        inner = jnp.where(col_border, b1, acc * k1 + b1)    # (Ho, W, C)

        # Single write per element, all stores are whole-row (slab) aligned.
        out_ref[0, pl.ds(1, Ho)] = inner
        border_row = jnp.broadcast_to(b1, (W, C))
        out_ref[0, 0] = border_row
        out_ref[0, H - 1] = border_row

    return kernel


def fused_bifpn_node(xs_nhwc, modes, coefs, conv_params):
    """One BiFPN node, NHWC in / NHWC out.

    xs_nhwc: list of (N, h_j, w_j, C) float32 arrays.
    modes:   per-input 'same' | 'up' (half-res source, nearest 2x upsample is
             fused) | 'down' (double-res source, 2x2 maxpool is fused).
    coefs:   (len(xs),) normalized weighted-add coefficients.
    conv_params: (k3 (C,3,3), b3 (C,), k1 (C,), b1 (C,)) depthwise weights.
    """
    k3, b3, k1, b1 = conv_params
    n_in = len(xs_nhwc)
    N, H, W, C = xs_nhwc[0].shape                    # modes[0] is always 'same'

    for x, m in zip(xs_nhwc, modes):
        if m == "same":
            assert x.shape == (N, H, W, C)
        elif m == "up":
            assert x.shape == (N, H // 2, W // 2, C)
        else:
            assert x.shape == (N, 2 * H, 2 * W, C)

    k3h = jnp.transpose(k3, (1, 2, 0)).astype(jnp.float32)       # (3, 3, C)
    b3h = b3.reshape(1, C).astype(jnp.float32)
    k1h = k1.reshape(1, C).astype(jnp.float32)
    b1h = b1.reshape(1, C).astype(jnp.float32)
    coefs = jnp.asarray(coefs, jnp.float32)

    def io_map(n):
        return (n, 0, 0, 0)

    in_specs = [pl.BlockSpec(memory_space=pltpu.MemorySpace.SMEM)]        # coefs
    for x in xs_nhwc:
        in_specs.append(pl.BlockSpec((1,) + x.shape[1:], io_map))         # inputs
    in_specs += [
        pl.BlockSpec((3, 3, C), lambda n: (0, 0, 0)),                     # k3
        pl.BlockSpec((1, C), lambda n: (0, 0)),                           # b3
        pl.BlockSpec((1, C), lambda n: (0, 0)),                           # k1
        pl.BlockSpec((1, C), lambda n: (0, 0)),                           # b1
    ]

    out = pl.pallas_call(
        _make_fused_kernel(tuple(modes), H, W, C),
        out_shape=jax.ShapeDtypeStruct((N, H, W, C), jnp.float32),
        grid=(N,),
        in_specs=in_specs,
        out_specs=pl.BlockSpec((1, H, W, C), io_map),
        compiler_params=pltpu.CompilerParams(
            dimension_semantics=("parallel",),
            vmem_limit_bytes=48 * 1024 * 1024),
    )(coefs, *[x.astype(jnp.float32) for x in xs_nhwc], k3h, b3h, k1h, b1h)
    return out


# ----------------------------------------------------------------------------
# Weighted-add coefficients (tiny scalar math, done in plain JAX).
# ----------------------------------------------------------------------------
def wadd_coefs(w, n_used, eps=1e-4):
    # BiFPNWeightedAdd: relu(w_i) / (sum(relu(w)) + eps); only the first n_used
    # weights appear in the numerator (matches the PyTorch code path).
    wr = jax.nn.relu(w)
    return wr[:n_used] / (wr.sum() + eps)


# ----------------------------------------------------------------------------
# BiFPNModule forward (Pallas-backed).  NCHW interface, NHWC internally.
# ----------------------------------------------------------------------------
def bifpn_forward_pallas(inputs_nchw, params, eps=1e-4):
    levels = len(inputs_nchw)
    feats = [jnp.transpose(x, (0, 2, 3, 1)) for x in inputs_nchw]   # once, at entry
    pathtd = list(feats)

    # top-down path (fused nearest-2x upsample of the coarser level)
    for conv_idx, i in enumerate(range(levels - 1, 0, -1)):
        coefs = wadd_coefs(params["tb_w"][conv_idx], 2, eps)
        pathtd[i - 1] = fused_bifpn_node(
            [pathtd[i - 1], pathtd[i]], ("same", "up"), coefs,
            params["tb_conv"][conv_idx])

    # bottom-up path (fused 2x2 maxpool of the finer level)
    for conv_idx, i in enumerate(range(0, levels - 2)):
        coefs = wadd_coefs(params["bt_w"][conv_idx], 3, eps)
        pathtd[i + 1] = fused_bifpn_node(
            [pathtd[i + 1], pathtd[i], feats[i + 1]], ("same", "down", "same"),
            coefs, params["bt_conv"][conv_idx])
    coefs = wadd_coefs(params["bt_w"][-1], 2, eps)
    pathtd[levels - 1] = fused_bifpn_node(
        [pathtd[levels - 1], pathtd[levels - 2]], ("same", "down"), coefs,
        params["bt_conv"][-1])

    return [jnp.transpose(x, (0, 3, 1, 2)) for x in pathtd]        # once, at exit


# ----------------------------------------------------------------------------
# Pure-JAX reference (mirrors the PyTorch module line by line, NCHW).
# ----------------------------------------------------------------------------
def upsample2x_nchw(x):   # F.interpolate(scale_factor=2, mode='nearest')
    return jnp.repeat(jnp.repeat(x, 2, axis=2), 2, axis=3)


def maxpool2x_nchw(x):    # F.max_pool2d(kernel_size=2)
    N, C, H, W = x.shape
    return x.reshape(N, C, H // 2, 2, W // 2, 2).max(axis=(3, 5))


def ref_dwconv_pair(x, k3, b3, k1, b1):
    C = x.shape[1]
    dn = ("NCHW", "OIHW", "NCHW")
    y = lax.conv_general_dilated(
        x, k3.reshape(C, 1, 3, 3), (1, 1), "VALID", feature_group_count=C,
        dimension_numbers=dn, precision=lax.Precision.HIGHEST)
    y = y + b3[None, :, None, None]
    z = lax.conv_general_dilated(
        y, k1.reshape(C, 1, 1, 1), (1, 1), ((1, 1), (1, 1)),
        feature_group_count=C, dimension_numbers=dn,
        precision=lax.Precision.HIGHEST)
    return z + b1[None, :, None, None]


def ref_wadd(inputs_list, w, eps=1e-4):
    wr = jax.nn.relu(w)
    s = sum(wr[idx] * inputs_list[idx] for idx in range(len(inputs_list)))
    return s / (wr.sum() + eps)


def bifpn_forward_ref(inputs, params, eps=1e-4):
    levels = len(inputs)
    pathtd = list(inputs)
    for conv_idx, i in enumerate(range(levels - 1, 0, -1)):
        pathtd[i - 1] = ref_wadd([pathtd[i - 1], upsample2x_nchw(pathtd[i])],
                                 params["tb_w"][conv_idx], eps)
        pathtd[i - 1] = ref_dwconv_pair(pathtd[i - 1], *params["tb_conv"][conv_idx])
    for conv_idx, i in enumerate(range(0, levels - 2)):
        pathtd[i + 1] = ref_wadd(
            [pathtd[i + 1], maxpool2x_nchw(pathtd[i]), inputs[i + 1]],
            params["bt_w"][conv_idx], eps)
        pathtd[i + 1] = ref_dwconv_pair(pathtd[i + 1], *params["bt_conv"][conv_idx])
    pathtd[levels - 1] = ref_wadd(
        [pathtd[levels - 1], maxpool2x_nchw(pathtd[levels - 2])],
        params["bt_w"][-1], eps)
    pathtd[levels - 1] = ref_dwconv_pair(pathtd[levels - 1], *params["bt_conv"][-1])
    return pathtd


# ----------------------------------------------------------------------------
# Deterministic parameter init (synthetic; shapes follow the module __init__).
# ----------------------------------------------------------------------------
def init_conv_pair(key, C):
    k_a, k_b, k_c, k_d = jax.random.split(key, 4)
    k3 = jax.random.normal(k_a, (C, 3, 3), jnp.float32) * (1.0 / 3.0)  # dw 3x3
    b3 = jax.random.normal(k_b, (C,), jnp.float32) * 0.1
    k1 = jax.random.normal(k_c, (C,), jnp.float32)                     # dw 1x1
    b1 = jax.random.normal(k_d, (C,), jnp.float32) * 0.1
    return (k3, b3, k1, b1)


def init_bifpn_params(key, channels, levels):
    keys = jax.random.split(key, 2 * (levels - 1))
    params = {
        # BiFPNWeightedAdd parameters: filled with 0.5 (PyTorch init).
        "tb_w": [jnp.full((2,), 0.5, jnp.float32) for _ in range(levels - 1)],
        "bt_w": [jnp.full((3 if idx != 3 else 2,), 0.5, jnp.float32)
                 for idx in range(levels - 1)],
        "tb_conv": [init_conv_pair(keys[i], channels) for i in range(levels - 1)],
        "bt_conv": [init_conv_pair(keys[levels - 1 + i], channels)
                    for i in range(levels - 1)],
    }
    return params


if __name__ == "__main__":
    # C=128 so the channel (lane) axis is fully dense on TPU vregs.
    N, C, levels, base = 2, 128, 3, 32
    key = jax.random.PRNGKey(0)
    k_in, k_par = jax.random.split(key)
    in_keys = jax.random.split(k_in, levels)

    # pyramid inputs (NCHW): (2,128,32,32), (2,128,16,16), (2,128,8,8)
    inputs = [
        jax.random.normal(in_keys[l], (N, C, base // (2 ** l), base // (2 ** l)),
                          jnp.float32)
        for l in range(levels)
    ]
    params = init_bifpn_params(k_par, C, levels)

    outs = bifpn_forward_pallas(inputs, params)
    outs = [jax.block_until_ready(o) for o in outs]

    refs = bifpn_forward_ref(inputs, params)
    for o, r in zip(outs, refs):
        np.testing.assert_allclose(np.asarray(o), np.asarray(r),
                                   atol=1e-3, rtol=1e-3)

    print("KERNEL_OK")
</pallas_src>

<mosaic_0001>
module attributes {stable_mosaic.version = 11 : i64} {
  func.func @kernel(%arg0: i32, %arg1: memref<2xf32, #tpu.memory_space<smem>>, %arg2: memref<1x16x16x128xf32, #tpu.memory_space<vmem>>, %arg3: memref<1x8x8x128xf32, #tpu.memory_space<vmem>>, %arg4: memref<3x3x128xf32, #tpu.memory_space<vmem>>, %arg5: memref<1x128xf32, #tpu.memory_space<vmem>>, %arg6: memref<1x128xf32, #tpu.memory_space<vmem>>, %arg7: memref<1x128xf32, #tpu.memory_space<vmem>>, %arg8: memref<1x16x16x128xf32, #tpu.memory_space<vmem>>) attributes {dimension_semantics = [#tpu.dimension_semantics<parallel>], iteration_bounds = array<i64: 2>, scalar_prefetch = 0 : i64, scratch_operands = 0 : i64, tpu.core_type = #tpu.core_type<tc>, window_params = [{transform_indices = @transform_0, window_bounds = array<i64: 2>}, {transform_indices = @transform_1, window_bounds = array<i64: 1, 16, 16, 128>}, {transform_indices = @transform_2, window_bounds = array<i64: 1, 8, 8, 128>}, {pipeline_mode = #tpu.pipeline_mode<synchronous>, transform_indices = @transform_3, window_bounds = array<i64: 3, 3, 128>}, {pipeline_mode = #tpu.pipeline_mode<synchronous>, transform_indices = @transform_4, window_bounds = array<i64: 1, 128>}, {pipeline_mode = #tpu.pipeline_mode<synchronous>, transform_indices = @transform_5, window_bounds = array<i64: 1, 128>}, {pipeline_mode = #tpu.pipeline_mode<synchronous>, transform_indices = @transform_6, window_bounds = array<i64: 1, 128>}, {transform_indices = @transform_7, window_bounds = array<i64: 1, 16, 16, 128>}]} {
    %c0 = arith.constant 0 : index
    %c0_0 = arith.constant 0 : index
    %c0_1 = arith.constant 0 : index
    %c0_2 = arith.constant 0 : index
    %0 = vector.load %arg2[%c0, %c0_0, %c0_1, %c0_2] : memref<1x16x16x128xf32, #tpu.memory_space<vmem>>, vector<1x16x16x128xf32>
    %1 = vector.shape_cast %0 : vector<1x16x16x128xf32> to vector<16x16x128xf32>
    %c0_3 = arith.constant 0 : index
    %2 = memref.load %arg1[%c0_3] : memref<2xf32, #tpu.memory_space<smem>>
    %3 = vector.broadcast %2 : f32 to vector<16x16x128xf32>
    %4 = arith.mulf %3, %1 : vector<16x16x128xf32>
    %c0_4 = arith.constant 0 : index
    %c0_5 = arith.constant 0 : index
    %c0_6 = arith.constant 0 : index
    %c0_7 = arith.constant 0 : index
    %5 = vector.load %arg3[%c0_4, %c0_5, %c0_6, %c0_7] : memref<1x8x8x128xf32, #tpu.memory_space<vmem>>, vector<1x8x8x128xf32>
    %6 = vector.shape_cast %5 : vector<1x8x8x128xf32> to vector<8x8x128xf32>
    %7 = vector.shape_cast %6 : vector<8x8x128xf32> to vector<8x1x8x128xf32>
    %8 = vector.shape_cast %6 : vector<8x8x128xf32> to vector<8x1x8x128xf32>
    %9 = tpu.concatenate %7, %8 in 1 : vector<8x1x8x128xf32>, vector<8x1x8x128xf32> -> vector<8x2x8x128xf32>
    %10 = vector.shape_cast %9 : vector<8x2x8x128xf32> to vector<16x8x128xf32>
    %11 = vector.extract_strided_slice %10 {offsets = [0, 0, 0], sizes = [16, 1, 128], strides = [1, 1, 1]} : vector<16x8x128xf32> to vector<16x1x128xf32>
    %12 = vector.extract_strided_slice %10 {offsets = [0, 0, 0], sizes = [16, 1, 128], strides = [1, 1, 1]} : vector<16x8x128xf32> to vector<16x1x128xf32>
    %13 = vector.extract_strided_slice %10 {offsets = [0, 1, 0], sizes = [16, 1, 128], strides = [1, 1, 1]} : vector<16x8x128xf32> to vector<16x1x128xf32>
    %14 = vector.extract_strided_slice %10 {offsets = [0, 1, 0], sizes = [16, 1, 128], strides = [1, 1, 1]} : vector<16x8x128xf32> to vector<16x1x128xf32>
    %15 = vector.extract_strided_slice %10 {offsets = [0, 2, 0], sizes = [16, 1, 128], strides = [1, 1, 1]} : vector<16x8x128xf32> to vector<16x1x128xf32>
    %16 = vector.extract_strided_slice %10 {offsets = [0, 2, 0], sizes = [16, 1, 128], strides = [1, 1, 1]} : vector<16x8x128xf32> to vector<16x1x128xf32>
    %17 = vector.extract_strided_slice %10 {offsets = [0, 3, 0], sizes = [16, 1, 128], strides = [1, 1, 1]} : vector<16x8x128xf32> to vector<16x1x128xf32>
    %18 = vector.extract_strided_slice %10 {offsets = [0, 3, 0], sizes = [16, 1, 128], strides = [1, 1, 1]} : vector<16x8x128xf32> to vector<16x1x128xf32>
    %19 = vector.extract_strided_slice %10 {offsets = [0, 4, 0], sizes = [16, 1, 128], strides = [1, 1, 1]} : vector<16x8x128xf32> to vector<16x1x128xf32>
    %20 = vector.extract_strided_slice %10 {offsets = [0, 4, 0], sizes = [16, 1, 128], strides = [1, 1, 1]} : vector<16x8x128xf32> to vector<16x1x128xf32>
    %21 = vector.extract_strided_slice %10 {offsets = [0, 5, 0], sizes = [16, 1, 128], strides = [1, 1, 1]} : vector<16x8x128xf32> to vector<16x1x128xf32>
    %22 = vector.extract_strided_slice %10 {offsets = [0, 5, 0], sizes = [16, 1, 128], strides = [1, 1, 1]} : vector<16x8x128xf32> to vector<16x1x128xf32>
    %23 = vector.extract_strided_slice %10 {offsets = [0, 6, 0], sizes = [16, 1, 128], strides = [1, 1, 1]} : vector<16x8x128xf32> to vector<16x1x128xf32>
    %24 = vector.extract_strided_slice %10 {offsets = [0, 6, 0], sizes = [16, 1, 128], strides = [1, 1, 1]} : vector<16x8x128xf32> to vector<16x1x128xf32>
    %25 = vector.extract_strided_slice %10 {offsets = [0, 7, 0], sizes = [16, 1, 128], strides = [1, 1, 1]} : vector<16x8x128xf32> to vector<16x1x128xf32>
    %26 = vector.extract_strided_slice %10 {offsets = [0, 7, 0], sizes = [16, 1, 128], strides = [1, 1, 1]} : vector<16x8x128xf32> to vector<16x1x128xf32>
    %27 = tpu.concatenate %11, %12, %13, %14, %15, %16, %17, %18, %19, %20, %21, %22, %23, %24, %25, %26 in 1 : vector<16x1x128xf32>, vector<16x1x128xf32>, vector<16x1x128xf32>, vector<16x1x128xf32>, vector<16x1x128xf32>, vector<16x1x128xf32>, vector<16x1x128xf32>, vector<16x1x128xf32>, vector<16x1x128xf32>, vector<16x1x128xf32>, vector<16x1x128xf32>, vector<16x1x128xf32>, vector<16x1x128xf32>, vector<16x1x128xf32>, vector<16x1x128xf32>, vector<16x1x128xf32> -> vector<16x16x128xf32>
    %c1 = arith.constant 1 : index
    %28 = memref.load %arg1[%c1] : memref<2xf32, #tpu.memory_space<smem>>
    %29 = vector.broadcast %28 : f32 to vector<16x16x128xf32>
    %30 = arith.mulf %29, %27 : vector<16x16x128xf32>
    %31 = arith.addf %4, %30 : vector<16x16x128xf32>
    %c0_8 = arith.constant 0 : index
    %c0_9 = arith.constant 0 : index
    %32 = vector.load %arg5[%c0_8, %c0_9] : memref<1x128xf32, #tpu.memory_space<vmem>>, vector<1x128xf32>
    %33 = vector.shape_cast %32 : vector<1x128xf32> to vector<128xf32>
    %c1_i32 = arith.constant 1 : i32
    %34 = tpu.dynamic_rotate %31 by %c1_i32 dim 1 : vector<16x16x128xf32>, i32 -> vector<16x16x128xf32>
    %35 = vector.extract_strided_slice %34 {offsets = [0, 0, 0], sizes = [14, 16, 128], strides = [1, 1, 1]} : vector<16x16x128xf32> to vector<14x16x128xf32>
    %c0_10 = arith.constant 0 : index
    %c0_11 = arith.constant 0 : index
    %c0_12 = arith.constant 0 : index
    %36 = vector.load %arg4[%c0_10, %c0_11, %c0_12] : memref<3x3x128xf32, #tpu.memory_space<vmem>>, vector<1x1x128xf32>
    %37 = vector.shape_cast %36 : vector<1x1x128xf32> to vector<128xf32>
    %38 = vector.shape_cast %37 : vector<128xf32> to vector<1x1x128xf32>
    %39 = vector.broadcast %38 : vector<1x1x128xf32> to vector<14x16x128xf32>
    %40 = arith.mulf %35, %39 : vector<14x16x128xf32>
    %41 = vector.shape_cast %33 : vector<128xf32> to vector<1x1x128xf32>
    %42 = vector.broadcast %41 : vector<1x1x128xf32> to vector<14x16x128xf32>
    %43 = arith.addf %40, %42 : vector<14x16x128xf32>
    %44 = vector.extract_strided_slice %34 {offsets = [1, 0, 0], sizes = [14, 16, 128], strides = [1, 1, 1]} : vector<16x16x128xf32> to vector<14x16x128xf32>
    %c1_13 = arith.constant 1 : index
    %c0_14 = arith.constant 0 : index
    %c0_15 = arith.constant 0 : index
    %45 = vector.load %arg4[%c1_13, %c0_14, %c0_15] : memref<3x3x128xf32, #tpu.memory_space<vmem>>, vector<1x1x128xf32>
    %46 = vector.shape_cast %45 : vector<1x1x128xf32> to vector<128xf32>
    %47 = vector.shape_cast %46 : vector<128xf32> to vector<1x1x128xf32>
    %48 = vector.broadcast %47 : vector<1x1x128xf32> to vector<14x16x128xf32>
    %49 = arith.mulf %44, %48 : vector<14x16x128xf32>
    %50 = arith.addf %43, %49 : vector<14x16x128xf32>
    %51 = vector.extract_strided_slice %34 {offsets = [2, 0, 0], sizes = [14, 16, 128], strides = [1, 1, 1]} : vector<16x16x128xf32> to vector<14x16x128xf32>
    %c2 = arith.constant 2 : index
    %c0_16 = arith.constant 0 : index
    %c0_17 = arith.constant 0 : index
    %52 = vector.load %arg4[%c2, %c0_16, %c0_17] : memref<3x3x128xf32, #tpu.memory_space<vmem>>, vector<1x1x128xf32>
    %53 = vector.shape_cast %52 : vector<1x1x128xf32> to vector<128xf32>
    %54 = vector.shape_cast %53 : vector<128xf32> to vector<1x1x128xf32>
    %55 = vector.broadcast %54 : vector<1x1x128xf32> to vector<14x16x128xf32>
    %56 = arith.mulf %51, %55 : vector<14x16x128xf32>
    %57 = arith.addf %50, %56 : vector<14x16x128xf32>
    %58 = vector.extract_strided_slice %31 {offsets = [0, 0, 0], sizes = [14, 16, 128], strides = [1, 1, 1]} : vector<16x16x128xf32> to vector<14x16x128xf32>
    %c0_18 = arith.constant 0 : index
    %c1_19 = arith.constant 1 : index
    %c0_20 = arith.constant 0 : index
    %59 = vector.load %arg4[%c0_18, %c1_19, %c0_20] : memref<3x3x128xf32, #tpu.memory_space<vmem>>, vector<1x1x128xf32>
    %60 = vector.shape_cast %59 : vector<1x1x128xf32> to vector<128xf32>
    %61 = vector.shape_cast %60 : vector<128xf32> to vector<1x1x128xf32>
    %62 = vector.broadcast %61 : vector<1x1x128xf32> to vector<14x16x128xf32>
    %63 = arith.mulf %58, %62 : vector<14x16x128xf32>
    %64 = arith.addf %57, %63 : vector<14x16x128xf32>
    %65 = vector.extract_strided_slice %31 {offsets = [1, 0, 0], sizes = [14, 16, 128], strides = [1, 1, 1]} : vector<16x16x128xf32> to vector<14x16x128xf32>
    %c1_21 = arith.constant 1 : index
    %c1_22 = arith.constant 1 : index
    %c0_23 = arith.constant 0 : index
    %66 = vector.load %arg4[%c1_21, %c1_22, %c0_23] : memref<3x3x128xf32, #tpu.memory_space<vmem>>, vector<1x1x128xf32>
    %67 = vector.shape_cast %66 : vector<1x1x128xf32> to vector<128xf32>
    %68 = vector.shape_cast %67 : vector<128xf32> to vector<1x1x128xf32>
    %69 = vector.broadcast %68 : vector<1x1x128xf32> to vector<14x16x128xf32>
    %70 = arith.mulf %65, %69 : vector<14x16x128xf32>
    %71 = arith.addf %64, %70 : vector<14x16x128xf32>
    %72 = vector.extract_strided_slice %31 {offsets = [2, 0, 0], sizes = [14, 16, 128], strides = [1, 1, 1]} : vector<16x16x128xf32> to vector<14x16x128xf32>
    %c2_24 = arith.constant 2 : index
    %c1_25 = arith.constant 1 : index
    %c0_26 = arith.constant 0 : index
    %73 = vector.load %arg4[%c2_24, %c1_25, %c0_26] : memref<3x3x128xf32, #tpu.memory_space<vmem>>, vector<1x1x128xf32>
    %74 = vector.shape_cast %73 : vector<1x1x128xf32> to vector<128xf32>
    %75 = vector.shape_cast %74 : vector<128xf32> to vector<1x1x128xf32>
    %76 = vector.broadcast %75 : vector<1x1x128xf32> to vector<14x16x128xf32>
    %77 = arith.mulf %72, %76 : vector<14x16x128xf32>
    %78 = arith.addf %71, %77 : vector<14x16x128xf32>
    %c15_i32 = arith.constant 15 : i32
    %79 = tpu.dynamic_rotate %31 by %c15_i32 dim 1 : vector<16x16x128xf32>, i32 -> vector<16x16x128xf32>
    %80 = vector.extract_strided_slice %79 {offsets = [0, 0, 0], sizes = [14, 16, 128], strides = [1, 1, 1]} : vector<16x16x128xf32> to vector<14x16x128xf32>
    %c0_27 = arith.constant 0 : index
    %c2_28 = arith.constant 2 : index
    %c0_29 = arith.constant 0 : index
    %81 = vector.load %arg4[%c0_27, %c2_28, %c0_29] : memref<3x3x128xf32, #tpu.memory_space<vmem>>, vector<1x1x128xf32>
    %82 = vector.shape_cast %81 : vector<1x1x128xf32> to vector<128xf32>
    %83 = vector.shape_cast %82 : vector<128xf32> to vector<1x1x128xf32>
    %84 = vector.broadcast %83 : vector<1x1x128xf32> to vector<14x16x128xf32>
    %85 = arith.mulf %80, %84 : vector<14x16x128xf32>
    %86 = arith.addf %78, %85 : vector<14x16x128xf32>
    %87 = vector.extract_strided_slice %79 {offsets = [1, 0, 0], sizes = [14, 16, 128], strides = [1, 1, 1]} : vector<16x16x128xf32> to vector<14x16x128xf32>
    %c1_30 = arith.constant 1 : index
    %c2_31 = arith.constant 2 : index
    %c0_32 = arith.constant 0 : index
    %88 = vector.load %arg4[%c1_30, %c2_31, %c0_32] : memref<3x3x128xf32, #tpu.memory_space<vmem>>, vector<1x1x128xf32>
    %89 = vector.shape_cast %88 : vector<1x1x128xf32> to vector<128xf32>
    %90 = vector.shape_cast %89 : vector<128xf32> to vector<1x1x128xf32>
    %91 = vector.broadcast %90 : vector<1x1x128xf32> to vector<14x16x128xf32>
    %92 = arith.mulf %87, %91 : vector<14x16x128xf32>
    %93 = arith.addf %86, %92 : vector<14x16x128xf32>
    %94 = vector.extract_strided_slice %79 {offsets = [2, 0, 0], sizes = [14, 16, 128], strides = [1, 1, 1]} : vector<16x16x128xf32> to vector<14x16x128xf32>
    %c2_33 = arith.constant 2 : index
    %c2_34 = arith.constant 2 : index
    %c0_35 = arith.constant 0 : index
    %95 = vector.load %arg4[%c2_33, %c2_34, %c0_35] : memref<3x3x128xf32, #tpu.memory_space<vmem>>, vector<1x1x128xf32>
    %96 = vector.shape_cast %95 : vector<1x1x128xf32> to vector<128xf32>
    %97 = vector.shape_cast %96 : vector<128xf32> to vector<1x1x128xf32>
    %98 = vector.broadcast %97 : vector<1x1x128xf32> to vector<14x16x128xf32>
    %99 = arith.mulf %94, %98 : vector<14x16x128xf32>
    %100 = arith.addf %93, %99 : vector<14x16x128xf32>
    %c0_36 = arith.constant 0 : index
    %c0_37 = arith.constant 0 : index
    %101 = vector.load %arg6[%c0_36, %c0_37] : memref<1x128xf32, #tpu.memory_space<vmem>>, vector<1x128xf32>
    %102 = vector.shape_cast %101 : vector<1x128xf32> to vector<128xf32>
    %c0_38 = arith.constant 0 : index
    %c0_39 = arith.constant 0 : index
    %103 = vector.load %arg7[%c0_38, %c0_39] : memref<1x128xf32, #tpu.memory_space<vmem>>, vector<1x128xf32>
    %104 = vector.shape_cast %103 : vector<1x128xf32> to vector<128xf32>
    %105 = tpu.iota {dimensions = array<i32: 1>} : vector<14x16x128xi32>
    %c0_i32 = arith.constant 0 : i32
    %106 = vector.broadcast %c0_i32 : i32 to vector<14x16x128xi32>
    %107 = arith.cmpi eq, %105, %106 : vector<14x16x128xi32>
    %c15_i32_40 = arith.constant 15 : i32
    %108 = vector.broadcast %c15_i32_40 : i32 to vector<14x16x128xi32>
    %109 = arith.cmpi eq, %105, %108 : vector<14x16x128xi32>
    %110 = arith.ori %107, %109 : vector<14x16x128xi1>
    %111 = vector.shape_cast %102 : vector<128xf32> to vector<1x1x128xf32>
    %112 = vector.broadcast %111 : vector<1x1x128xf32> to vector<14x16x128xf32>
    %113 = arith.mulf %100, %112 : vector<14x16x128xf32>
    %114 = vector.shape_cast %104 : vector<128xf32> to vector<1x1x128xf32>
    %115 = vector.broadcast %114 : vector<1x1x128xf32> to vector<14x16x128xf32>
    %116 = arith.addf %113, %115 : vector<14x16x128xf32>
    %117 = vector.shape_cast %104 : vector<128xf32> to vector<1x1x128xf32>
    %118 = vector.broadcast %117 : vector<1x1x128xf32> to vector<14x16x128xf32>
    %119 = arith.select %110, %118, %116 : vector<14x16x128xi1>, vector<14x16x128xf32>
    %c0_41 = arith.constant 0 : index
    %c1_42 = arith.constant 1 : index
    %c0_43 = arith.constant 0 : index
    %c0_44 = arith.constant 0 : index
    %120 = vector.load %arg8[%c0_41, %c1_42, %c0_43, %c0_44] : memref<1x16x16x128xf32, #tpu.memory_space<vmem>>, vector<1x14x16x128xf32>
    %121 = vector.shape_cast %120 : vector<1x14x16x128xf32> to vector<14x16x128xf32>
    %122 = vector.shape_cast %119 : vector<14x16x128xf32> to vector<1x14x16x128xf32>
    tpu.vector_store %arg8[%c0_41, %c1_42, %c0_43, %c0_44], %122 {strides = array<i32>} : memref<1x16x16x128xf32, #tpu.memory_space<vmem>>, vector<1x14x16x128xf32>,
    %123 = vector.shape_cast %104 : vector<128xf32> to vector<1x128xf32>
    %124 = vector.broadcast %123 : vector<1x128xf32> to vector<16x128xf32>
    %c0_45 = arith.constant 0 : index
    %c0_46 = arith.constant 0 : index
    %c0_47 = arith.constant 0 : index
    %c0_48 = arith.constant 0 : index
    %125 = vector.load %arg8[%c0_45, %c0_46, %c0_47, %c0_48] : memref<1x16x16x128xf32, #tpu.memory_space<vmem>>, vector<1x1x16x128xf32>
    %126 = vector.shape_cast %125 : vector<1x1x16x128xf32> to vector<16x128xf32>
    %127 = vector.shape_cast %124 : vector<16x128xf32> to vector<1x1x16x128xf32>
    tpu.vector_store %arg8[%c0_45, %c0_46, %c0_47, %c0_48], %127 {strides = array<i32>} : memref<1x16x16x128xf32, #tpu.memory_space<vmem>>, vector<1x1x16x128xf32>,
    %c0_49 = arith.constant 0 : index
    %c15 = arith.constant 15 : index
    %c0_50 = arith.constant 0 : index
    %c0_51 = arith.constant 0 : index
    %128 = vector.load %arg8[%c0_49, %c15, %c0_50, %c0_51] : memref<1x16x16x128xf32, #tpu.memory_space<vmem>>, vector<1x1x16x128xf32>
    %129 = vector.shape_cast %128 : vector<1x1x16x128xf32> to vector<16x128xf32>
    %130 = vector.shape_cast %124 : vector<16x128xf32> to vector<1x1x16x128xf32>
    tpu.vector_store %arg8[%c0_49, %c15, %c0_50, %c0_51], %130 {strides = array<i32>} : memref<1x16x16x128xf32, #tpu.memory_space<vmem>>, vector<1x1x16x128xf32>,
    return
  }
  func.func @transform_0(%arg0: i32) -> i32 {
    %c0_i32 = arith.constant 0 : i32
    %c0_i32_0 = arith.constant 0 : i32
    return %c0_i32 : i32
  }
  func.func @transform_1(%arg0: i32) -> (i32, i32, i32, i32) {
    %c0_i32 = arith.constant 0 : i32
    %c0_i32_0 = arith.constant 0 : i32
    %c0_i32_1 = arith.constant 0 : i32
    %c0_i32_2 = arith.constant 0 : i32
    return %arg0, %c0_i32, %c0_i32_0, %c0_i32_1 : i32, i32, i32, i32
  }
  func.func @transform_2(%arg0: i32) -> (i32, i32, i32, i32) {
    %c0_i32 = arith.constant 0 : i32
    %c0_i32_0 = arith.constant 0 : i32
    %c0_i32_1 = arith.constant 0 : i32
    %c0_i32_2 = arith.constant 0 : i32
    return %arg0, %c0_i32, %c0_i32_0, %c0_i32_1 : i32, i32, i32, i32
  }
  func.func @transform_3(%arg0: i32) -> (i32, i32, i32) {
    %c0_i32 = arith.constant 0 : i32
    %c0_i32_0 = arith.constant 0 : i32
    %c0_i32_1 = arith.constant 0 : i32
    %c0_i32_2 = arith.constant 0 : i32
    return %c0_i32, %c0_i32_0, %c0_i32_1 : i32, i32, i32
  }
  func.func @transform_4(%arg0: i32) -> (i32, i32) {
    %c0_i32 = arith.constant 0 : i32
    %c0_i32_0 = arith.constant 0 : i32
    %c0_i32_1 = arith.constant 0 : i32
    return %c0_i32, %c0_i32_0 : i32, i32
  }
  func.func @transform_5(%arg0: i32) -> (i32, i32) {
    %c0_i32 = arith.constant 0 : i32
    %c0_i32_0 = arith.constant 0 : i32
    %c0_i32_1 = arith.constant 0 : i32
    return %c0_i32, %c0_i32_0 : i32, i32
  }
  func.func @transform_6(%arg0: i32) -> (i32, i32) {
    %c0_i32 = arith.constant 0 : i32
    %c0_i32_0 = arith.constant 0 : i32
    %c0_i32_1 = arith.constant 0 : i32
    return %c0_i32, %c0_i32_0 : i32, i32
  }
  func.func @transform_7(%arg0: i32) -> (i32, i32, i32, i32) {
    %c0_i32 = arith.constant 0 : i32
    %c0_i32_0 = arith.constant 0 : i32
    %c0_i32_1 = arith.constant 0 : i32
    %c0_i32_2 = arith.constant 0 : i32
    return %arg0, %c0_i32, %c0_i32_0, %c0_i32_1 : i32, i32, i32, i32
  }
}

</mosaic_0001>

<llo_original>
// kernel: tpu_custom_call.1
$region0: #{tpu_custom_call.1}
  #allocation0 [shape = 'u32[]', space=smem, size = 0x4, offset = 0x4, fixed_abs, tag = 'smem constant byte address 0x4 - core index']
  #allocation1 [shape = 'u32[144,128]{1,0:T(1,128)}', space=vmem, size = 0x12000, scoped, tag = 'internal scratch']
  %s0 = inlined_call_operand.hbm [shape: f32[2], index: 0, kind: input, shape index: {}]
  %s1 = inlined_call_operand.hbm [shape: f32[2,16,16,128], index: 1, kind: input, shape index: {}]
  %s2 = inlined_call_operand.hbm [shape: f32[2,8,8,128], index: 2, kind: input, shape index: {}]
  %s3 = inlined_call_operand.hbm [shape: f32[3,3,128], index: 3, kind: input, shape index: {}]
  %s4 = inlined_call_operand.vmem [shape: f32[1,128], index: 4, kind: input, shape index: {}]
  %s5 = inlined_call_operand.vmem [shape: f32[1,128], index: 5, kind: input, shape index: {}]
  %s6 = inlined_call_operand.vmem [shape: f32[1,128], index: 6, kind: input, shape index: {}]
  %s7 = inlined_call_operand.hbm [shape: f32[2,16,16,128], index: 7, kind: output, shape index: {}]
  %s8 = sld [smem:[#allocation0]]
  $region77: #{tpu_custom_call.1} parent=0
    _
  %s10 = ssub.s32 1, %s8
  %s11 = scalar_select 0, %s10, %s8
  $region1: #{tpu_custom_call.1} parent=0
    #allocation2 [shape = 'u8[512]{0}', space=smem, size = 0x200, scoped, tag = 'input window, operand 0, single buffered']
    #allocation3 [shape = 's32[2]{0}', space=sflag, size = 0x8, scoped, tag = 'scoped memory for tpu_custom_call.1']
    #allocation4 [shape = 's32[2]{0}', space=sflag, size = 0x8, scoped, tag = 'scoped memory for tpu_custom_call.1']
    #allocation5 [shape = 's32[2]{0}', space=sflag, size = 0x8, scoped, tag = 'scoped memory for tpu_custom_call.1']
    #allocation6 [shape = 'u8[262144]{0}', space=vmem, size = 0x40000, scoped, tag = 'input window, operand 1']
    #allocation7 [shape = 'u8[65536]{0}', space=vmem, size = 0x10000, scoped, tag = 'input window, operand 2']
    #allocation8 [shape = 's32[2]{0}', space=sflag, size = 0x8, scoped, tag = 'scoped memory for tpu_custom_call.1']
    #allocation9 [shape = 'u8[6144]{0}', space=vmem, size = 0x1800, scoped, tag = 'input window, operand 3, single buffered']
    #allocation10 [shape = 'u8[262144]{0}', space=vmem, size = 0x40000, scoped, tag = 'output window, operand 0']
    %12 = vsyncpa [#allocation5], 0
    %13 = vsyncpa [#allocation3], 0
    %s14 = scalar_lea.sflag [#allocation3], 1
    %15 = vsyncpa %s14, 0
    %16 = vsyncpa [#allocation8], 0
    %s17 = scalar_lea.sflag [#allocation8], 1
    %18 = vsyncpa %s17, 0
    %19 = vsyncpa [#allocation4], 0
    %s20 = scalar_lea.sflag [#allocation4], 1
    %21 = vsyncpa %s20, 0
    loop: start=0, step=1, limit=4
    $region2: #{tpu_custom_call.1} parent=1 // loop_pre_header
      _
    $region3: #{tpu_custom_call.1} parent=1 // loop_header
      %s23 = sphi 0, %s27
      %p24 = scmp.ge.s32.totalorder %s23, 4
      %s31 = sphi 0, %s31
      %s33 = sphi 0, %s31
      %s34 = sphi 0, %s33
      %s48 = sphi 0, %s34
      %s54 = sphi 0, %s56
      %s57 = sphi 0, %s54
      %s58 = sphi 0, %s57
      %s74 = sphi 0, %s58
      %s80 = sphi 0, %s82
      %s83 = sphi 0, %s80
      %s84 = sphi 0, %s83
      %s100 = sphi 0, %s84
      %s104 = sphi 0, %s104
      %s106 = sphi 0, %s104
      %s107 = sphi 0, %s106
      %s121 = sphi 0, %s107
      %s125 = sphi 0, %s125
      %s127 = sphi 0, %s125
      %s128 = sphi 0, %s127
      %s142 = sphi 0, %s128
      %s146 = sphi 0, %s146
      %s148 = sphi 0, %s146
      %s149 = sphi 0, %s148
      %s163 = sphi 0, %s149
      %s167 = sphi 0, %s167
      %s169 = sphi 0, %s167
      %s170 = sphi 0, %s169
      %s184 = sphi 0, %s170
      %s190 = sphi 0, %s192
      %s193 = sphi 0, %s190
      %s194 = sphi 0, %s193
      %s210 = sphi 0, %s194
    $region4: #{tpu_custom_call.1} parent=1 // loop_header_branch
      %26 = sbr.rel (%p24) target = $region8
    $region5: #{tpu_custom_call.1} parent=1 // loop_body
      %s28 = ssub.s32 %s23, 1
      %s29 = ssub.s32 %s23, 2
      %s30 = sadd.s32 %s23, 1
      %s32 = sadd.s32 %s31, 1
      %p35 = scmp.eq.s32.totalorder %s23, 1
      %p36 = scmp.ne.s32.totalorder %s31, %s33
      %p37 = scmp.eq.s32.totalorder %s23, 0
      %p38 = por %p36, %p37
      %p39 = scmp.ne.s32.totalorder %s31, %s33
      %p40 = scmp.eq.s32.totalorder %s28, 1
      %p41 = por %p39, %p40
      %p42 = scmp.ne.s32.totalorder %s33, %s34
      %p43 = scmp.eq.s32.totalorder %s28, 0
      %p44 = por %p42, %p43
      %p45 = scmp.ne.s32.totalorder %s33, %s34
      %p46 = scmp.eq.s32.totalorder %s29, 1
      %p47 = por %p45, %p46
      %p49 = scmp.ne.s32.totalorder %s34, %s48
      %p50 = scmp.eq.s32.totalorder %s29, 0
      %p51 = por %p49, %p50
      %s52 = ssub.s32 %s23, %s30
      %p53 = scmp.eq.s32.totalorder %s52, 0
      %s55 = sadd.s32 %s54, 1
      %s56 = scalar_select %p53, %s54, %s55
      %p59 = pneg %p53
      %p60 = scmp.eq.s32.totalorder %s23, 1
      %p61 = por %p59, %p60
      %p62 = scmp.ne.s32.totalorder %s54, %s57
      %p63 = scmp.eq.s32.totalorder %s23, 0
      %p64 = por %p62, %p63
      %p65 = scmp.ne.s32.totalorder %s54, %s57
      %p66 = scmp.eq.s32.totalorder %s28, 1
      %p67 = por %p65, %p66
      %p68 = scmp.ne.s32.totalorder %s57, %s58
      %p69 = scmp.eq.s32.totalorder %s28, 0
      %p70 = por %p68, %p69
      %p71 = scmp.ne.s32.totalorder %s57, %s58
      %p72 = scmp.eq.s32.totalorder %s29, 1
      %p73 = por %p71, %p72
      %p75 = scmp.ne.s32.totalorder %s58, %s74
      %p76 = scmp.eq.s32.totalorder %s29, 0
      %p77 = por %p75, %p76
      %s78 = ssub.s32 %s23, %s30
      %p79 = scmp.eq.s32.totalorder %s78, 0
      %s81 = sadd.s32 %s80, 1
      %s82 = scalar_select %p79, %s80, %s81
      %p85 = pneg %p79
      %p86 = scmp.eq.s32.totalorder %s23, 1
      %p87 = por %p85, %p86
      %p88 = scmp.ne.s32.totalorder %s80, %s83
      %p89 = scmp.eq.s32.totalorder %s23, 0
      %p90 = por %p88, %p89
      %p91 = scmp.ne.s32.totalorder %s80, %s83
      %p92 = scmp.eq.s32.totalorder %s28, 1
      %p93 = por %p91, %p92
      %p94 = scmp.ne.s32.totalorder %s83, %s84
      %p95 = scmp.eq.s32.totalorder %s28, 0
      %p96 = por %p94, %p95
      %p97 = scmp.ne.s32.totalorder %s83, %s84
      %p98 = scmp.eq.s32.totalorder %s29, 1
      %p99 = por %p97, %p98
      %p101 = scmp.ne.s32.totalorder %s84, %s100
      %p102 = scmp.eq.s32.totalorder %s29, 0
      %p103 = por %p101, %p102
      %s105 = sadd.s32 %s104, 1
      %p108 = scmp.eq.s32.totalorder %s23, 1
      %p109 = scmp.ne.s32.totalorder %s104, %s106
      %p110 = scmp.eq.s32.totalorder %s23, 0
      %p111 = por %p109, %p110
      %p112 = scmp.ne.s32.totalorder %s104, %s106
      %p113 = scmp.eq.s32.totalorder %s28, 1
      %p114 = por %p112, %p113
      %p115 = scmp.ne.s32.totalorder %s106, %s107
      %p116 = scmp.eq.s32.totalorder %s28, 0
      %p117 = por %p115, %p116
      %p118 = scmp.ne.s32.totalorder %s106, %s107
      %p119 = scmp.eq.s32.totalorder %s29, 1
      %p120 = por %p118, %p119
      %p122 = scmp.ne.s32.totalorder %s107, %s121
      %p123 = scmp.eq.s32.totalorder %s29, 0
      %p124 = por %p122, %p123
      %s126 = sadd.s32 %s125, 1
      %p129 = scmp.eq.s32.totalorder %s23, 1
      %p130 = scmp.ne.s32.totalorder %s125, %s127
      %p131 = scmp.eq.s32.totalorder %s23, 0
      %p132 = por %p130, %p131
      %p133 = scmp.ne.s32.totalorder %s125, %s127
      %p134 = scmp.eq.s32.totalorder %s28, 1
      %p135 = por %p133, %p134
      %p136 = scmp.ne.s32.totalorder %s127, %s128
      %p137 = scmp.eq.s32.totalorder %s28, 0
      %p138 = por %p136, %p137
      %p139 = scmp.ne.s32.totalorder %s127, %s128
      %p140 = scmp.eq.s32.totalorder %s29, 1
      %p141 = por %p139, %p140
      %p143 = scmp.ne.s32.totalorder %s128, %s142
      %p144 = scmp.eq.s32.totalorder %s29, 0
      %p145 = por %p143, %p144
      %s147 = sadd.s32 %s146, 1
      %p150 = scmp.eq.s32.totalorder %s23, 1
      %p151 = scmp.ne.s32.totalorder %s146, %s148
      %p152 = scmp.eq.s32.totalorder %s23, 0
      %p153 = por %p151, %p152
      %p154 = scmp.ne.s32.totalorder %s146, %s148
      %p155 = scmp.eq.s32.totalorder %s28, 1
      %p156 = por %p154, %p155
      %p157 = scmp.ne.s32.totalorder %s148, %s149
      %p158 = scmp.eq.s32.totalorder %s28, 0
      %p159 = por %p157, %p158
      %p160 = scmp.ne.s32.totalorder %s148, %s149
      %p161 = scmp.eq.s32.totalorder %s29, 1
      %p162 = por %p160, %p161
      %p164 = scmp.ne.s32.totalorder %s149, %s163
      %p165 = scmp.eq.s32.totalorder %s29, 0
      %p166 = por %p164, %p165
      %s168 = sadd.s32 %s167, 1
      %p171 = scmp.eq.s32.totalorder %s23, 1
      %p172 = scmp.ne.s32.totalorder %s167, %s169
      %p173 = scmp.eq.s32.totalorder %s23, 0
      %p174 = por %p172, %p173
      %p175 = scmp.ne.s32.totalorder %s167, %s169
      %p176 = scmp.eq.s32.totalorder %s28, 1
      %p177 = por %p175, %p176
      %p178 = scmp.ne.s32.totalorder %s169, %s170
      %p179 = scmp.eq.s32.totalorder %s28, 0
      %p180 = por %p178, %p179
      %p181 = scmp.ne.s32.totalorder %s169, %s170
      %p182 = scmp.eq.s32.totalorder %s29, 1
      %p183 = por %p181, %p182
      %p185 = scmp.ne.s32.totalorder %s170, %s184
      %p186 = scmp.eq.s32.totalorder %s29, 0
      %p187 = por %p185, %p186
      %s188 = ssub.s32 %s23, %s30
      %p189 = scmp.eq.s32.totalorder %s188, 0
      %s191 = sadd.s32 %s190, 1
      %s192 = scalar_select %p189, %s190, %s191
      %p195 = pneg %p189
      %p196 = scmp.eq.s32.totalorder %s23, 1
      %p197 = por %p195, %p196
      %p198 = scmp.ne.s32.totalorder %s190, %s193
      %p199 = scmp.eq.s32.totalorder %s23, 0
      %p200 = por %p198, %p199
      %p201 = scmp.ne.s32.totalorder %s190, %s193
      %p202 = scmp.eq.s32.totalorder %s28, 1
      %p203 = por %p201, %p202
      %p204 = scmp.ne.s32.totalorder %s193, %s194
      %p205 = scmp.eq.s32.totalorder %s28, 0
      %p206 = por %p204, %p205
      %p207 = scmp.ne.s32.totalorder %s193, %s194
      %p208 = scmp.eq.s32.totalorder %s29, 1
      %p209 = por %p207, %p208
      %p211 = scmp.ne.s32.totalorder %s194, %s210
      %p212 = scmp.eq.s32.totalorder %s29, 0
      %p213 = por %p211, %p212
      %p214 = scmp.le.s32.totalorder 1, %s23
      %p215 = scmp.lt.s32.totalorder %s23, 3
      %p216 = pnand %p214, %p215
      %p217 = pneg %p216
      // Predicated region
      $region9: #{tpu_custom_call.1} parent=5 // pred_check
        _
      $region10: #{tpu_custom_call.1} parent=5 // pred_check_branch
        %219 = sbr.rel (%p216) target = $region12
      $region11: #{tpu_custom_call.1} parent=5 // pred_region
        %s220 = ssub.s32 %s23, 1
        // Predicated region
        $region13: #{tpu_custom_call.1} parent=11 // pred_check
          %p221 = pneg %p44
        $region14: #{tpu_custom_call.1} parent=11 // pred_check_branch
          %223 = sbr.rel (%p221) target = $region16
        $region15: #{tpu_custom_call.1} parent=11 // pred_region
          %s225 = ssub.s32 16, 16
          %226 = vsyncadd [#allocation5], %s225
          %229 = dma.hbm_to_smem %s0, 16, [#allocation2], [#allocation5]
        $region16: #{tpu_custom_call.1} parent=11 // pred_fallthru
          _
        // Predicated region
        $region17: #{tpu_custom_call.1} parent=11 // pred_check
          %p230 = pneg %p117
        $region18: #{tpu_custom_call.1} parent=11 // pred_check_branch
          %232 = sbr.rel (%p230) target = $region20
        $region19: #{tpu_custom_call.1} parent=11 // pred_region
          %s234 = ssub.s32 192, 192
          %235 = vsyncadd [#allocation8], %s234
          %s236 = sshll.u32 [#allocation9], 4
          %s237 = int_to_ptr.vmem [resolvable:$true] %s236
          %242 = dma.hbm_to_vmem [thread:$0]  %s3, 192, %s237, [#allocation8], 64, 64, 4
        $region20: #{tpu_custom_call.1} parent=11 // pred_fallthru
          _
        // Predicated region
        $region21: #{tpu_custom_call.1} parent=11 // pred_check
          %p243 = pneg %p138
        $region22: #{tpu_custom_call.1} parent=11 // pred_check_branch
          %245 = sbr.rel (%p243) target = $region24
        $region23: #{tpu_custom_call.1} parent=11 // pred_region
          _
        $region24: #{tpu_custom_call.1} parent=11 // pred_fallthru
          _
        // Predicated region
        $region25: #{tpu_custom_call.1} parent=11 // pred_check
          %p246 = pneg %p159
        $region26: #{tpu_custom_call.1} parent=11 // pred_check_branch
          %248 = sbr.rel (%p246) target = $region28
        $region27: #{tpu_custom_call.1} parent=11 // pred_region
          _
        $region28: #{tpu_custom_call.1} parent=11 // pred_fallthru
          _
        // Predicated region
        $region29: #{tpu_custom_call.1} parent=11 // pred_check
          %p249 = pneg %p180
        $region30: #{tpu_custom_call.1} parent=11 // pred_check_branch
          %251 = sbr.rel (%p249) target = $region32
        $region31: #{tpu_custom_call.1} parent=11 // pred_region
          _
        $region32: #{tpu_custom_call.1} parent=11 // pred_fallthru
          _
      $region12: #{tpu_custom_call.1} parent=5 // pred_fallthru
        _
      %p252 = scmp.lt.s32.totalorder %s23, 2
      // Predicated region
      $region33: #{tpu_custom_call.1} parent=5 // pred_check
        %p253 = pneg %p252
      $region34: #{tpu_custom_call.1} parent=5 // pred_check_branch
        %255 = sbr.rel (%p253) target = $region36
      $region35: #{tpu_custom_call.1} parent=5 // pred_region
        // Predicated region
        $region37: #{tpu_custom_call.1} parent=35 // pred_check
          %p256 = pneg %p64
        $region38: #{tpu_custom_call.1} parent=35 // pred_check_branch
          %258 = sbr.rel (%p256) target = $region40
        $region39: #{tpu_custom_call.1} parent=35 // pred_region
          %s259 = sand.u32 %s54, 1
          %s260 = scalar_lea.sflag [#allocation3], %s259
          %s261 = sand.u32 %s54, 1
          %s262 = smul.addr %s261, 256
          %s263 = scalar_lea.vmem [#allocation6], %s262
          %s265 = ssub.s32 4096, 4096
          %266 = vsyncadd %s260, %s265
          %s267 = smul.addr %s23, 32
          %s268 = smul.addr %s267, 128
          %s269 = scalar_lea.hbm %s1, %s268
          %s270 = sshll.u32 %s263, 4
          %s271 = int_to_ptr.vmem [resolvable:$true] %s270
          %276 = dma.hbm_to_vmem [thread:$0]  %s269, 4096, %s271, %s260, 128, 128, 8
        $region40: #{tpu_custom_call.1} parent=35 // pred_fallthru
          _
        // Predicated region
        $region41: #{tpu_custom_call.1} parent=35 // pred_check
          %p277 = pneg %p90
        $region42: #{tpu_custom_call.1} parent=35 // pred_check_branch
          %279 = sbr.rel (%p277) target = $region44
        $region43: #{tpu_custom_call.1} parent=35 // pred_region
          %s280 = sand.u32 %s23, 1
          %s281 = scalar_lea.sflag [#allocation8], %s280
          %s282 = sand.u32 %s80, 1
          %s283 = smul.addr %s282, 64
          %s284 = scalar_lea.vmem [#allocation7], %s283
          %s286 = ssub.s32 1024, 1024
          %287 = vsyncadd %s281, %s286
          %s288 = smul.addr %s23, 8
          %s289 = smul.addr %s288, 128
          %s290 = scalar_lea.hbm %s2, %s289
          %s291 = sshll.u32 %s284, 4
          %s292 = int_to_ptr.vmem [resolvable:$true] %s291
          %297 = dma.hbm_to_vmem [thread:$0]  %s290, 1024, %s292, %s281, 128, 128, 8
        $region44: #{tpu_custom_call.1} parent=35 // pred_fallthru
          _
      $region36: #{tpu_custom_call.1} parent=5 // pred_fallthru
        _
      %p298 = scmp.le.s32.totalorder 1, %s23
      %p299 = scmp.lt.s32.totalorder %s23, 3
      %p300 = pnand %p298, %p299
      %p301 = pneg %p300
      // Predicated region
      $region45: #{tpu_custom_call.1} parent=5 // pred_check
        _
      $region46: #{tpu_custom_call.1} parent=5 // pred_check_branch
        %303 = sbr.rel (%p300) target = $region48
      $region47: #{tpu_custom_call.1} parent=5 // pred_region
        %s304 = ssub.s32 %s23, 1
        // Predicated region
        $region49: #{tpu_custom_call.1} parent=47 // pred_check
          %p305 = pneg %p44
        $region50: #{tpu_custom_call.1} parent=47 // pred_check_branch
          %307 = sbr.rel (%p305) target = $region52
        $region51: #{tpu_custom_call.1} parent=47 // pred_region
          %308 = dma.done [#allocation5], 16
        $region52: #{tpu_custom_call.1} parent=47 // pred_fallthru
          _
        %s309 = sand.u32 %s57, 1
        %s310 = scalar_lea.sflag [#allocation3], %s309
        %s311 = sand.u32 %s57, 1
        %s312 = smul.addr %s311, 256
        %s313 = scalar_lea.vmem [#allocation6], %s312
        // Predicated region
        $region53: #{tpu_custom_call.1} parent=47 // pred_check
          %p314 = pneg %p70
        $region54: #{tpu_custom_call.1} parent=47 // pred_check_branch
          %316 = sbr.rel (%p314) target = $region56
        $region55: #{tpu_custom_call.1} parent=47 // pred_region
          %317 = dma.done %s310, 4096
        $region56: #{tpu_custom_call.1} parent=47 // pred_fallthru
          _
        %s318 = sand.u32 %s28, 1
        %s319 = scalar_lea.sflag [#allocation8], %s318
        %s320 = sand.u32 %s83, 1
        %s321 = smul.addr %s320, 64
        %s322 = scalar_lea.vmem [#allocation7], %s321
        // Predicated region
        $region57: #{tpu_custom_call.1} parent=47 // pred_check
          %p323 = pneg %p96
        $region58: #{tpu_custom_call.1} parent=47 // pred_check_branch
          %325 = sbr.rel (%p323) target = $region60
        $region59: #{tpu_custom_call.1} parent=47 // pred_region
          %326 = dma.done %s319, 1024
        $region60: #{tpu_custom_call.1} parent=47 // pred_fallthru
          _
        // Predicated region
        $region61: #{tpu_custom_call.1} parent=47 // pred_check
          %p327 = pneg %p117
        $region62: #{tpu_custom_call.1} parent=47 // pred_check_branch
          %329 = sbr.rel (%p327) target = $region64
        $region63: #{tpu_custom_call.1} parent=47 // pred_region
          %330 = dma.done [#allocation8], 192
        $region64: #{tpu_custom_call.1} parent=47 // pred_fallthru
          _
        %331 = sfence
        %p332 = pneg %p44
        %p333 = pneg %p41
        %s334 = sand.u32 %s57, 1
        %s335 = scalar_lea.sflag [#allocation3], %s334
        %s336 = sand.u32 %s57, 1
        %s337 = smul.addr %s336, 256
        %s338 = scalar_lea.vmem [#allocation6], %s337
        %p339 = pneg %p70
        %p340 = pneg %p67
        %s341 = sand.u32 %s28, 1
        %s342 = scalar_lea.sflag [#allocation8], %s341
        %s343 = sand.u32 %s83, 1
        %s344 = smul.addr %s343, 64
        %s345 = scalar_lea.vmem [#allocation7], %s344
        %p346 = pneg %p96
        %p347 = pneg %p93
        %p348 = pneg %p117
        %p349 = pneg %p114
        %p350 = pneg %p138
        %p351 = pneg %p135
        %p352 = pneg %p159
        %p353 = pneg %p156
        %p354 = pneg %p180
        %p355 = pneg %p177
        %p356 = pneg %p206
        %p357 = pneg %p203
        %s358 = sand.u32 %s193, 1
        %s359 = scalar_lea.sflag [#allocation4], %s358
        %s360 = sand.u32 %s193, 1
        %s361 = smul.addr %s360, 256
        %s362 = scalar_lea.vmem [#allocation10], %s361
        %v363 = vld [vmem:[%s313] sm:$0xff]
        %v364 = vld [vmem:[%s313 + $0x8] sm:$0xff]
        %v365 = vld [vmem:[%s313 + $0x10] sm:$0xff]
        %v366 = vld [vmem:[%s313 + $0x18] sm:$0xff]
        %v367 = vld [vmem:[%s313 + $0x20] sm:$0xff]
        %v368 = vld [vmem:[%s313 + $0x28] sm:$0xff]
        %v369 = vld [vmem:[%s313 + $0x30] sm:$0xff]
        %v370 = vld [vmem:[%s313 + $0x38] sm:$0xff]
        %v371 = vld [vmem:[%s313 + $0x40] sm:$0xff]
        %v372 = vld [vmem:[%s313 + $0x48] sm:$0xff]
        %v373 = vld [vmem:[%s313 + $0x50] sm:$0xff]
        %v374 = vld [vmem:[%s313 + $0x58] sm:$0xff]
        %v375 = vld [vmem:[%s313 + $0x60] sm:$0xff]
        %v376 = vld [vmem:[%s313 + $0x68] sm:$0xff]
        %v377 = vld [vmem:[%s313 + $0x70] sm:$0xff]
        %v378 = vld [vmem:[%s313 + $0x78] sm:$0xff]
        %v379 = vld [vmem:[%s313 + $0x80] sm:$0xff]
        %v380 = vld [vmem:[%s313 + $0x88] sm:$0xff]
        %v381 = vld [vmem:[%s313 + $0x90] sm:$0xff]
        %v382 = vld [vmem:[%s313 + $0x98] sm:$0xff]
        %v383 = vld [vmem:[%s313 + $0xa0] sm:$0xff]
        %v384 = vld [vmem:[%s313 + $0xa8] sm:$0xff]
        %v385 = vld [vmem:[%s313 + $0xb0] sm:$0xff]
        %v386 = vld [vmem:[%s313 + $0xb8] sm:$0xff]
        %v387 = vld [vmem:[%s313 + $0xc0] sm:$0xff]
        %v388 = vld [vmem:[%s313 + $0xc8] sm:$0xff]
        %v389 = vld [vmem:[%s313 + $0xd0] sm:$0xff]
        %v390 = vld [vmem:[%s313 + $0xd8] sm:$0xff]
        %v391 = vld [vmem:[%s313 + $0xe0] sm:$0xff]
        %v392 = vld [vmem:[%s313 + $0xe8] sm:$0xff]
        %v393 = vld [vmem:[%s313 + $0xf0] sm:$0xff]
        %v394 = vld [vmem:[%s313 + $0xf8] sm:$0xff]
        %s395 = sld [smem:[#allocation2]]
        %v396 = vstv %s395
        %v397 = vmul.f32 %v396, %v363
        %v398 = vmul.f32 %v396, %v364
        %v399 = vmul.f32 %v396, %v365
        %v400 = vmul.f32 %v396, %v366
        %v401 = vmul.f32 %v396, %v367
        %v402 = vmul.f32 %v396, %v368
        %v403 = vmul.f32 %v396, %v369
        %v404 = vmul.f32 %v396, %v370
        %v405 = vmul.f32 %v396, %v371
        %v406 = vmul.f32 %v396, %v372
        %v407 = vmul.f32 %v396, %v373
        %v408 = vmul.f32 %v396, %v374
        %v409 = vmul.f32 %v396, %v375
        %v410 = vmul.f32 %v396, %v376
        %v411 = vmul.f32 %v396, %v377
        %v412 = vmul.f32 %v396, %v378
        %v413 = vmul.f32 %v396, %v379
        %v414 = vmul.f32 %v396, %v380
        %v415 = vmul.f32 %v396, %v381
        %v416 = vmul.f32 %v396, %v382
        %v417 = vmul.f32 %v396, %v383
        %v418 = vmul.f32 %v396, %v384
        %v419 = vmul.f32 %v396, %v385
        %v420 = vmul.f32 %v396, %v386
        %v421 = vmul.f32 %v396, %v387
        %v422 = vmul.f32 %v396, %v388
        %v423 = vmul.f32 %v396, %v389
        %v424 = vmul.f32 %v396, %v390
        %v425 = vmul.f32 %v396, %v391
        %v426 = vmul.f32 %v396, %v392
        %v427 = vmul.f32 %v396, %v393
        %v428 = vmul.f32 %v396, %v394
        %v429 = vld [vmem:[%s322] sm:$0xff]
        %v430 = vld [vmem:[%s322 + $0x8] sm:$0xff]
        %v431 = vld [vmem:[%s322 + $0x10] sm:$0xff]
        %v432 = vld [vmem:[%s322 + $0x18] sm:$0xff]
        %v433 = vld [vmem:[%s322 + $0x20] sm:$0xff]
        %v434 = vld [vmem:[%s322 + $0x28] sm:$0xff]
        %v435 = vld [vmem:[%s322 + $0x30] sm:$0xff]
        %v436 = vld [vmem:[%s322 + $0x38] sm:$0xff]
        %v445 = vrot.slane %v429, 7
        %v446 = vrot.slane %v430, 7
        %v447 = vrot.slane %v431, 7
        %v448 = vrot.slane %v432, 7
        %v449 = vrot.slane %v433, 7
        %v450 = vrot.slane %v434, 7
        %v451 = vrot.slane %v435, 7
        %v452 = vrot.slane %v436, 7
        %v461 = vrot.slane %v429, 6
        %v462 = vrot.slane %v430, 6
        %v463 = vrot.slane %v431, 6
        %v464 = vrot.slane %v432, 6
        %v465 = vrot.slane %v433, 6
        %v466 = vrot.slane %v434, 6
        %v467 = vrot.slane %v435, 6
        %v468 = vrot.slane %v436, 6
        %v477 = vrot.slane %v429, 5
        %v478 = vrot.slane %v430, 5
        %v479 = vrot.slane %v431, 5
        %v480 = vrot.slane %v432, 5
        %v481 = vrot.slane %v433, 5
        %v482 = vrot.slane %v434, 5
        %v483 = vrot.slane %v435, 5
        %v484 = vrot.slane %v436, 5
        %v493 = vrot.slane %v429, 4
        %v494 = vrot.slane %v430, 4
        %v495 = vrot.slane %v431, 4
        %v496 = vrot.slane %v432, 4
        %v497 = vrot.slane %v433, 4
        %v498 = vrot.slane %v434, 4
        %v499 = vrot.slane %v435, 4
        %v500 = vrot.slane %v436, 4
        %v509 = vrot.slane %v429, 3
        %v510 = vrot.slane %v430, 3
        %v511 = vrot.slane %v431, 3
        %v512 = vrot.slane %v432, 3
        %v513 = vrot.slane %v433, 3
        %v514 = vrot.slane %v434, 3
        %v515 = vrot.slane %v435, 3
        %v516 = vrot.slane %v436, 3
        %v525 = vrot.slane %v429, 2
        %v526 = vrot.slane %v430, 2
        %v527 = vrot.slane %v431, 2
        %v528 = vrot.slane %v432, 2
        %v529 = vrot.slane %v433, 2
        %v530 = vrot.slane %v434, 2
        %v531 = vrot.slane %v435, 2
        %v532 = vrot.slane %v436, 2
        %v541 = vrot.slane %v429, 1
        %v542 = vrot.slane %v430, 1
        %v543 = vrot.slane %v431, 1
        %v544 = vrot.slane %v432, 1
        %v545 = vrot.slane %v433, 1
        %v546 = vrot.slane %v434, 1
        %v547 = vrot.slane %v435, 1
        %v548 = vrot.slane %v436, 1
        %vm557 = vcmask 1040384
        %v558 = vsel %vm557, %v429, %v445
        %v559 = vsel %vm557, %v430, %v446
        %v560 = vsel %vm557, %v431, %v447
        %v561 = vsel %vm557, %v432, %v448
        %v562 = vsel %vm557, %v433, %v449
        %v563 = vsel %vm557, %v434, %v450
        %v564 = vsel %vm557, %v435, %v451
        %v565 = vsel %vm557, %v436, %v452
        %vm566 = vcmask 1041408
        %v567 = vsel %vm566, %v558, %v445
        %v568 = vsel %vm566, %v559, %v446
        %v569 = vsel %vm566, %v560, %v447
        %v570 = vsel %vm566, %v561, %v448
        %v571 = vsel %vm566, %v562, %v449
        %v572 = vsel %vm566, %v563, %v450
        %v573 = vsel %vm566, %v564, %v451
        %v574 = vsel %vm566, %v565, %v452
        %vm575 = vcmask 1042432
        %v576 = vsel %vm575, %v567, %v461
        %v577 = vsel %vm575, %v568, %v462
        %v578 = vsel %vm575, %v569, %v463
        %v579 = vsel %vm575, %v570, %v464
        %v580 = vsel %vm575, %v571, %v465
        %v581 = vsel %vm575, %v572, %v466
        %v582 = vsel %vm575, %v573, %v467
        %v583 = vsel %vm575, %v574, %v468
        %vm584 = vcmask 1043456
        %v585 = vsel %vm584, %v576, %v461
        %v586 = vsel %vm584, %v577, %v462
        %v587 = vsel %vm584, %v578, %v463
        %v588 = vsel %vm584, %v579, %v464
        %v589 = vsel %vm584, %v580, %v465
        %v590 = vsel %vm584, %v581, %v466
        %v591 = vsel %vm584, %v582, %v467
        %v592 = vsel %vm584, %v583, %v468
        %vm593 = vcmask 1044480
        %v594 = vsel %vm593, %v585, %v477
        %v595 = vsel %vm593, %v586, %v478
        %v596 = vsel %vm593, %v587, %v479
        %v597 = vsel %vm593, %v588, %v480
        %v598 = vsel %vm593, %v589, %v481
        %v599 = vsel %vm593, %v590, %v482
        %v600 = vsel %vm593, %v591, %v483
        %v601 = vsel %vm593, %v592, %v484
        %vm602 = vcmask 1045504
        %v603 = vsel %vm602, %v594, %v477
        %v604 = vsel %vm602, %v595, %v478
        %v605 = vsel %vm602, %v596, %v479
        %v606 = vsel %vm602, %v597, %v480
        %v607 = vsel %vm602, %v598, %v481
        %v608 = vsel %vm602, %v599, %v482
        %v609 = vsel %vm602, %v600, %v483
        %v610 = vsel %vm602, %v601, %v484
        %vm611 = vcmask 1046528
        %v612 = vsel %vm611, %v603, %v493
        %v613 = vsel %vm611, %v604, %v494
        %v614 = vsel %vm611, %v605, %v495
        %v615 = vsel %vm611, %v606, %v496
        %v616 = vsel %vm611, %v607, %v497
        %v617 = vsel %vm611, %v608, %v498
        %v618 = vsel %vm611, %v609, %v499
        %v619 = vsel %vm611, %v610, %v500
        %v620 = vsel %vm557, %v493, %v509
        %v621 = vsel %vm557, %v494, %v510
        %v622 = vsel %vm557, %v495, %v511
        %v623 = vsel %vm557, %v496, %v512
        %v624 = vsel %vm557, %v497, %v513
        %v625 = vsel %vm557, %v498, %v514
        %v626 = vsel %vm557, %v499, %v515
        %v627 = vsel %vm557, %v500, %v516
        %v628 = vsel %vm566, %v620, %v509
        %v629 = vsel %vm566, %v621, %v510
        %v630 = vsel %vm566, %v622, %v511
        %v631 = vsel %vm566, %v623, %v512
        %v632 = vsel %vm566, %v624, %v513
        %v633 = vsel %vm566, %v625, %v514
        %v634 = vsel %vm566, %v626, %v515
        %v635 = vsel %vm566, %v627, %v516
        %v636 = vsel %vm575, %v628, %v525
        %v637 = vsel %vm575, %v629, %v526
        %v638 = vsel %vm575, %v630, %v527
        %v639 = vsel %vm575, %v631, %v528
        %v640 = vsel %vm575, %v632, %v529
        %v641 = vsel %vm575, %v633, %v530
        %v642 = vsel %vm575, %v634, %v531
        %v643 = vsel %vm575, %v635, %v532
        %v644 = vsel %vm584, %v636, %v525
        %v645 = vsel %vm584, %v637, %v526
        %v646 = vsel %vm584, %v638, %v527
        %v647 = vsel %vm584, %v639, %v528
        %v648 = vsel %vm584, %v640, %v529
        %v649 = vsel %vm584, %v641, %v530
        %v650 = vsel %vm584, %v642, %v531
        %v651 = vsel %vm584, %v643, %v532
        %v652 = vsel %vm593, %v644, %v541
        %v653 = vsel %vm593, %v645, %v542
        %v654 = vsel %vm593, %v646, %v543
        %v655 = vsel %vm593, %v647, %v544
        %v656 = vsel %vm593, %v648, %v545
        %v657 = vsel %vm593, %v649, %v546
        %v658 = vsel %vm593, %v650, %v547
        %v659 = vsel %vm593, %v651, %v548
        %v660 = vsel %vm602, %v652, %v541
        %v661 = vsel %vm602, %v653, %v542
        %v662 = vsel %vm602, %v654, %v543
        %v663 = vsel %vm602, %v655, %v544
        %v664 = vsel %vm602, %v656, %v545
        %v665 = vsel %vm602, %v657, %v546
        %v666 = vsel %vm602, %v658, %v547
        %v667 = vsel %vm602, %v659, %v548
        %v668 = vsel %vm611, %v660, %v429
        %v669 = vsel %vm611, %v661, %v430
        %v670 = vsel %vm611, %v662, %v431
        %v671 = vsel %vm611, %v663, %v432
        %v672 = vsel %vm611, %v664, %v433
        %v673 = vsel %vm611, %v665, %v434
        %v674 = vsel %vm611, %v666, %v435
        %v675 = vsel %vm611, %v667, %v436
        %s676 = sld [smem:[#allocation2 + $0x1]]
        %v677 = vstv %s676
        %v678 = vmul.f32 %v677, %v612
        %v679 = vmul.f32 %v677, %v668
        %v680 = vmul.f32 %v677, %v613
        %v681 = vmul.f32 %v677, %v669
        %v682 = vmul.f32 %v677, %v614
        %v683 = vmul.f32 %v677, %v670
        %v684 = vmul.f32 %v677, %v615
        %v685 = vmul.f32 %v677, %v671
        %v686 = vmul.f32 %v677, %v616
        %v687 = vmul.f32 %v677, %v672
        %v688 = vmul.f32 %v677, %v617
        %v689 = vmul.f32 %v677, %v673
        %v690 = vmul.f32 %v677, %v618
        %v691 = vmul.f32 %v677, %v674
        %v692 = vmul.f32 %v677, %v619
        %v693 = vmul.f32 %v677, %v675
        %v694 = vadd.f32 %v397, %v678
        %v695 = vadd.f32 %v398, %v679
        %v696 = vadd.f32 %v399, %v678
        %v697 = vadd.f32 %v400, %v679
        %v698 = vadd.f32 %v401, %v680
        %v699 = vadd.f32 %v402, %v681
        %v700 = vadd.f32 %v403, %v680
        %v701 = vadd.f32 %v404, %v681
        %v702 = vadd.f32 %v405, %v682
        %v703 = vadd.f32 %v406, %v683
        %v704 = vadd.f32 %v407, %v682
        %v705 = vadd.f32 %v408, %v683
        %v706 = vadd.f32 %v409, %v684
        %v707 = vadd.f32 %v410, %v685
        %v708 = vadd.f32 %v411, %v684
        %v709 = vadd.f32 %v412, %v685
        %v710 = vadd.f32 %v413, %v686
        %v711 = vadd.f32 %v414, %v687
        %v712 = vadd.f32 %v415, %v686
        %v713 = vadd.f32 %v416, %v687
        %v714 = vadd.f32 %v417, %v688
        %v715 = vadd.f32 %v418, %v689
        %v716 = vadd.f32 %v419, %v688
        %v717 = vadd.f32 %v420, %v689
        %v718 = vadd.f32 %v421, %v690
        %v719 = vadd.f32 %v422, %v691
        %v720 = vadd.f32 %v423, %v690
        %v721 = vadd.f32 %v424, %v691
        %v722 = vadd.f32 %v425, %v692
        %v723 = vadd.f32 %v426, %v693
        %v724 = vadd.f32 %v427, %v692
        %v725 = vadd.f32 %v428, %v693
        %v726 = vld [vmem:[%s4] sm:$0x1]
        %v727 = vrot.slane %v694, 7
        %v728 = vrot.slane %v696, 7
        %v729 = vrot.slane %v698, 7
        %v730 = vrot.slane %v700, 7
        %v731 = vrot.slane %v702, 7
        %v732 = vrot.slane %v704, 7
        %v733 = vrot.slane %v706, 7
        %v734 = vrot.slane %v708, 7
        %v735 = vrot.slane %v710, 7
        %v736 = vrot.slane %v712, 7
        %v737 = vrot.slane %v714, 7
        %v738 = vrot.slane %v716, 7
        %v739 = vrot.slane %v718, 7
        %v740 = vrot.slane %v720, 7
        %v741 = vrot.slane %v722, 7
        %v742 = vrot.slane %v724, 7
        %v743 = vrot.slane %v695, 7
        %v744 = vrot.slane %v697, 7
        %v745 = vrot.slane %v699, 7
        %v746 = vrot.slane %v701, 7
        %v747 = vrot.slane %v703, 7
        %v748 = vrot.slane %v705, 7
        %v749 = vrot.slane %v707, 7
        %v750 = vrot.slane %v709, 7
        %v751 = vrot.slane %v711, 7
        %v752 = vrot.slane %v713, 7
        %v753 = vrot.slane %v715, 7
        %v754 = vrot.slane %v717, 7
        %v755 = vrot.slane %v719, 7
        %v756 = vrot.slane %v721, 7
        %v757 = vrot.slane %v723, 7
        %v758 = vrot.slane %v725, 7
        %v759 = vlaneseq
        %v760 = vshrl.u32 %v759, 7
        %vm761 = vcmp.lt.s32.totalorder %v760, 1
        %v762 = vsel %vm761, %v727, %v743
        %v763 = vsel %vm761, %v728, %v744
        %v764 = vsel %vm761, %v729, %v745
        %v765 = vsel %vm761, %v730, %v746
        %v766 = vsel %vm761, %v731, %v747
        %v767 = vsel %vm761, %v732, %v748
        %v768 = vsel %vm761, %v733, %v749
        %v769 = vsel %vm761, %v734, %v750
        %v770 = vsel %vm761, %v735, %v751
        %v771 = vsel %vm761, %v736, %v752
        %v772 = vsel %vm761, %v737, %v753
        %v773 = vsel %vm761, %v738, %v754
        %v774 = vsel %vm761, %v739, %v755
        %v775 = vsel %vm761, %v740, %v756
        %v776 = vsel %vm761, %v741, %v757
        %v777 = vsel %vm761, %v742, %v758
        %v778 = vsel %vm761, %v743, %v727
        %v779 = vsel %vm761, %v744, %v728
        %v780 = vsel %vm761, %v745, %v729
        %v781 = vsel %vm761, %v746, %v730
        %v782 = vsel %vm761, %v747, %v731
        %v783 = vsel %vm761, %v748, %v732
        %v784 = vsel %vm761, %v749, %v733
        %v785 = vsel %vm761, %v750, %v734
        %v786 = vsel %vm761, %v751, %v735
        %v787 = vsel %vm761, %v752, %v736
        %v788 = vsel %vm761, %v753, %v737
        %v789 = vsel %vm761, %v754, %v738
        %v790 = vsel %vm761, %v755, %v739
        %v791 = vsel %vm761, %v756, %v740
        %v792 = vsel %vm761, %v757, %v741
        %v793 = vsel %vm761, %v758, %v742
        %v794 = vld [vmem:[#allocation9] sm:$0x1]
        %v795 = vlaneseq
        %v796 = vshrl.u32 %v795, 7
        %v797 = vsub.s32 0, %v796
        %v798 = vrot.slane %v794, %v797
        %v799 = vmul.f32 %v778, %v798
        %v800 = vmul.f32 %v762, %v798
        %v801 = vmul.f32 %v779, %v798
        %v802 = vmul.f32 %v763, %v798
        %v803 = vmul.f32 %v780, %v798
        %v804 = vmul.f32 %v764, %v798
        %v805 = vmul.f32 %v781, %v798
        %v806 = vmul.f32 %v765, %v798
        %v807 = vmul.f32 %v782, %v798
        %v808 = vmul.f32 %v766, %v798
        %v809 = vmul.f32 %v783, %v798
        %v810 = vmul.f32 %v767, %v798
        %v811 = vmul.f32 %v784, %v798
        %v812 = vmul.f32 %v768, %v798
        %v813 = vmul.f32 %v785, %v798
        %v814 = vmul.f32 %v769, %v798
        %v815 = vmul.f32 %v786, %v798
        %v816 = vmul.f32 %v770, %v798
        %v817 = vmul.f32 %v787, %v798
        %v818 = vmul.f32 %v771, %v798
        %v819 = vmul.f32 %v788, %v798
        %v820 = vmul.f32 %v772, %v798
        %v821 = vmul.f32 %v789, %v798
        %v822 = vmul.f32 %v773, %v798
        %v823 = vmul.f32 %v790, %v798
        %v824 = vmul.f32 %v774, %v798
        %v825 = vmul.f32 %v791, %v798
        %v826 = vmul.f32 %v775, %v798
        %v828 = vlaneseq
        %v829 = vshrl.u32 %v828, 7
        %v830 = vsub.s32 0, %v829
        %v831 = vrot.slane %v726, %v830
        %v833 = vadd.f32 %v799, %v831
        %v834 = vadd.f32 %v800, %v831
        %v835 = vadd.f32 %v801, %v831
        %v836 = vadd.f32 %v802, %v831
        %v837 = vadd.f32 %v803, %v831
        %v838 = vadd.f32 %v804, %v831
        %v839 = vadd.f32 %v805, %v831
        %v840 = vadd.f32 %v806, %v831
        %v841 = vadd.f32 %v807, %v831
        %v842 = vadd.f32 %v808, %v831
        %v843 = vadd.f32 %v809, %v831
        %v844 = vadd.f32 %v810, %v831
        %v845 = vadd.f32 %v811, %v831
        %v846 = vadd.f32 %v812, %v831
        %v847 = vadd.f32 %v813, %v831
        %v848 = vadd.f32 %v814, %v831
        %v849 = vadd.f32 %v815, %v831
        %v850 = vadd.f32 %v816, %v831
        %v851 = vadd.f32 %v817, %v831
        %v852 = vadd.f32 %v818, %v831
        %v853 = vadd.f32 %v819, %v831
        %v854 = vadd.f32 %v820, %v831
        %v855 = vadd.f32 %v821, %v831
        %v856 = vadd.f32 %v822, %v831
        %v857 = vadd.f32 %v823, %v831
        %v858 = vadd.f32 %v824, %v831
        %v859 = vadd.f32 %v825, %v831
        %v860 = vadd.f32 %v826, %v831
        %s861 = scalar_lea.vmem [#allocation9], 4
        %v862 = vld [vmem:[%s861] sm:$0x1]
        %v863 = vlaneseq
        %v864 = vshrl.u32 %v863, 7
        %v865 = vsub.s32 0, %v864
        %v866 = vrot.slane %v862, %v865
        %v867 = vmul.f32 %v779, %v866
        %v868 = vmul.f32 %v763, %v866
        %v869 = vmul.f32 %v780, %v866
        %v870 = vmul.f32 %v764, %v866
        %v871 = vmul.f32 %v781, %v866
        %v872 = vmul.f32 %v765, %v866
        %v873 = vmul.f32 %v782, %v866
        %v874 = vmul.f32 %v766, %v866
        %v875 = vmul.f32 %v783, %v866
        %v876 = vmul.f32 %v767, %v866
        %v877 = vmul.f32 %v784, %v866
        %v878 = vmul.f32 %v768, %v866
        %v879 = vmul.f32 %v785, %v866
        %v880 = vmul.f32 %v769, %v866
        %v881 = vmul.f32 %v786, %v866
        %v882 = vmul.f32 %v770, %v866
        %v883 = vmul.f32 %v787, %v866
        %v884 = vmul.f32 %v771, %v866
        %v885 = vmul.f32 %v788, %v866
        %v886 = vmul.f32 %v772, %v866
        %v887 = vmul.f32 %v789, %v866
        %v888 = vmul.f32 %v773, %v866
        %v889 = vmul.f32 %v790, %v866
        %v890 = vmul.f32 %v774, %v866
        %v891 = vmul.f32 %v791, %v866
        %v892 = vmul.f32 %v775, %v866
        %v893 = vmul.f32 %v792, %v866
        %v894 = vmul.f32 %v776, %v866
        %v895 = vadd.f32 %v833, %v867
        %v896 = vadd.f32 %v834, %v868
        %v897 = vadd.f32 %v835, %v869
        %v898 = vadd.f32 %v836, %v870
        %v899 = vadd.f32 %v837, %v871
        %v900 = vadd.f32 %v838, %v872
        %v901 = vadd.f32 %v839, %v873
        %v902 = vadd.f32 %v840, %v874
        %v903 = vadd.f32 %v841, %v875
        %v904 = vadd.f32 %v842, %v876
        %v905 = vadd.f32 %v843, %v877
        %v906 = vadd.f32 %v844, %v878
        %v907 = vadd.f32 %v845, %v879
        %v908 = vadd.f32 %v846, %v880
        %v909 = vadd.f32 %v847, %v881
        %v910 = vadd.f32 %v848, %v882
        %v911 = vadd.f32 %v849, %v883
        %v912 = vadd.f32 %v850, %v884
        %v913 = vadd.f32 %v851, %v885
        %v914 = vadd.f32 %v852, %v886
        %v915 = vadd.f32 %v853, %v887
        %v916 = vadd.f32 %v854, %v888
        %v917 = vadd.f32 %v855, %v889
        %v918 = vadd.f32 %v856, %v890
        %v919 = vadd.f32 %v857, %v891
        %v920 = vadd.f32 %v858, %v892
        %v921 = vadd.f32 %v859, %v893
        %v922 = vadd.f32 %v860, %v894
        %s923 = scalar_lea.vmem [#allocation9], 8
        %v924 = vld [vmem:[%s923] sm:$0x1]
        %v925 = vlaneseq
        %v926 = vshrl.u32 %v925, 7
        %v927 = vsub.s32 0, %v926
        %v928 = vrot.slane %v924, %v927
        %v929 = vmul.f32 %v780, %v928
        %v930 = vmul.f32 %v764, %v928
        %v931 = vmul.f32 %v781, %v928
        %v932 = vmul.f32 %v765, %v928
        %v933 = vmul.f32 %v782, %v928
        %v934 = vmul.f32 %v766, %v928
        %v935 = vmul.f32 %v783, %v928
        %v936 = vmul.f32 %v767, %v928
        %v937 = vmul.f32 %v784, %v928
        %v938 = vmul.f32 %v768, %v928
        %v939 = vmul.f32 %v785, %v928
        %v940 = vmul.f32 %v769, %v928
        %v941 = vmul.f32 %v786, %v928
        %v942 = vmul.f32 %v770, %v928
        %v943 = vmul.f32 %v787, %v928
        %v944 = vmul.f32 %v771, %v928
        %v945 = vmul.f32 %v788, %v928
        %v946 = vmul.f32 %v772, %v928
        %v947 = vmul.f32 %v789, %v928
        %v948 = vmul.f32 %v773, %v928
        %v949 = vmul.f32 %v790, %v928
        %v950 = vmul.f32 %v774, %v928
        %v951 = vmul.f32 %v791, %v928
        %v952 = vmul.f32 %v775, %v928
        %v953 = vmul.f32 %v792, %v928
        %v954 = vmul.f32 %v776, %v928
        %v955 = vmul.f32 %v793, %v928
        %v956 = vmul.f32 %v777, %v928
        %v957 = vadd.f32 %v895, %v929
        %v958 = vadd.f32 %v896, %v930
        %v959 = vadd.f32 %v897, %v931
        %v960 = vadd.f32 %v898, %v932
        %v961 = vadd.f32 %v899, %v933
        %v962 = vadd.f32 %v900, %v934
        %v963 = vadd.f32 %v901, %v935
        %v964 = vadd.f32 %v902, %v936
        %v965 = vadd.f32 %v903, %v937
        %v966 = vadd.f32 %v904, %v938
        %v967 = vadd.f32 %v905, %v939
        %v968 = vadd.f32 %v906, %v940
        %v969 = vadd.f32 %v907, %v941
        %v970 = vadd.f32 %v908, %v942
        %v971 = vadd.f32 %v909, %v943
        %v972 = vadd.f32 %v910, %v944
        %v973 = vadd.f32 %v911, %v945
        %v974 = vadd.f32 %v912, %v946
        %v975 = vadd.f32 %v913, %v947
        %v976 = vadd.f32 %v914, %v948
        %v977 = vadd.f32 %v915, %v949
        %v978 = vadd.f32 %v916, %v950
        %v979 = vadd.f32 %v917, %v951
        %v980 = vadd.f32 %v918, %v952
        %v981 = vadd.f32 %v919, %v953
        %v982 = vadd.f32 %v920, %v954
        %v983 = vadd.f32 %v921, %v955
        %v984 = vadd.f32 %v922, %v956
        %v985 = vld [vmem:[#allocation9 + $0x1] sm:$0x1]
        %v986 = vlaneseq
        %v987 = vshrl.u32 %v986, 7
        %v988 = vsub.s32 0, %v987
        %v989 = vrot.slane %v985, %v988
        %v990 = vmul.f32 %v694, %v989
        %v991 = vmul.f32 %v695, %v989
        %v992 = vmul.f32 %v696, %v989
        %v993 = vmul.f32 %v697, %v989
        %v994 = vmul.f32 %v698, %v989
        %v995 = vmul.f32 %v699, %v989
        %v996 = vmul.f32 %v700, %v989
        %v997 = vmul.f32 %v701, %v989
        %v998 = vmul.f32 %v702, %v989
        %v999 = vmul.f32 %v703, %v989
        %v1000 = vmul.f32 %v704, %v989
        %v1001 = vmul.f32 %v705, %v989
        %v1002 = vmul.f32 %v706, %v989
        %v1003 = vmul.f32 %v707, %v989
        %v1004 = vmul.f32 %v708, %v989
        %v1005 = vmul.f32 %v709, %v989
        %v1006 = vmul.f32 %v710, %v989
        %v1007 = vmul.f32 %v711, %v989
        %v1008 = vmul.f32 %v712, %v989
        %v1009 = vmul.f32 %v713, %v989
        %v1010 = vmul.f32 %v714, %v989
        %v1011 = vmul.f32 %v715, %v989
        %v1012 = vmul.f32 %v716, %v989
        %v1013 = vmul.f32 %v717, %v989
        %v1014 = vmul.f32 %v718, %v989
        %v1015 = vmul.f32 %v719, %v989
        %v1016 = vmul.f32 %v720, %v989
        %v1017 = vmul.f32 %v721, %v989
        %v1018 = vadd.f32 %v957, %v990
        %v1019 = vadd.f32 %v958, %v991
        %v1020 = vadd.f32 %v959, %v992
        %v1021 = vadd.f32 %v960, %v993
        %v1022 = vadd.f32 %v961, %v994
        %v1023 = vadd.f32 %v962, %v995
        %v1024 = vadd.f32 %v963, %v996
        %v1025 = vadd.f32 %v964, %v997
        %v1026 = vadd.f32 %v965, %v998
        %v1027 = vadd.f32 %v966, %v999
        %v1028 = vadd.f32 %v967, %v1000
        %v1029 = vadd.f32 %v968, %v1001
        %v1030 = vadd.f32 %v969, %v1002
        %v1031 = vadd.f32 %v970, %v1003
        %v1032 = vadd.f32 %v971, %v1004
        %v1033 = vadd.f32 %v972, %v1005
        %v1034 = vadd.f32 %v973, %v1006
        %v1035 = vadd.f32 %v974, %v1007
        %v1036 = vadd.f32 %v975, %v1008
        %v1037 = vadd.f32 %v976, %v1009
        %v1038 = vadd.f32 %v977, %v1010
        %v1039 = vadd.f32 %v978, %v1011
        %v1040 = vadd.f32 %v979, %v1012
        %v1041 = vadd.f32 %v980, %v1013
        %v1042 = vadd.f32 %v981, %v1014
        %v1043 = vadd.f32 %v982, %v1015
        %v1044 = vadd.f32 %v983, %v1016
        %v1045 = vadd.f32 %v984, %v1017
        %v1046 = vld [vmem:[%s861 + $0x1] sm:$0x1]
        %v1047 = vlaneseq
        %v1048 = vshrl.u32 %v1047, 7
        %v1049 = vsub.s32 0, %v1048
        %v1050 = vrot.slane %v1046, %v1049
        %v1051 = vmul.f32 %v696, %v1050
        %v1052 = vmul.f32 %v697, %v1050
        %v1053 = vmul.f32 %v698, %v1050
        %v1054 = vmul.f32 %v699, %v1050
        %v1055 = vmul.f32 %v700, %v1050
        %v1056 = vmul.f32 %v701, %v1050
        %v1057 = vmul.f32 %v702, %v1050
        %v1058 = vmul.f32 %v703, %v1050
        %v1059 = vmul.f32 %v704, %v1050
        %v1060 = vmul.f32 %v705, %v1050
        %v1061 = vmul.f32 %v706, %v1050
        %v1062 = vmul.f32 %v707, %v1050
        %v1063 = vmul.f32 %v708, %v1050
        %v1064 = vmul.f32 %v709, %v1050
        %v1065 = vmul.f32 %v710, %v1050
        %v1066 = vmul.f32 %v711, %v1050
        %v1067 = vmul.f32 %v712, %v1050
        %v1068 = vmul.f32 %v713, %v1050
        %v1069 = vmul.f32 %v714, %v1050
        %v1070 = vmul.f32 %v715, %v1050
        %v1071 = vmul.f32 %v716, %v1050
        %v1072 = vmul.f32 %v717, %v1050
        %v1073 = vmul.f32 %v718, %v1050
        %v1074 = vmul.f32 %v719, %v1050
        %v1075 = vmul.f32 %v720, %v1050
        %v1076 = vmul.f32 %v721, %v1050
        %v1077 = vmul.f32 %v722, %v1050
        %v1078 = vmul.f32 %v723, %v1050
        %v1079 = vadd.f32 %v1018, %v1051
        %v1080 = vadd.f32 %v1019, %v1052
        %v1081 = vadd.f32 %v1020, %v1053
        %v1082 = vadd.f32 %v1021, %v1054
        %v1083 = vadd.f32 %v1022, %v1055
        %v1084 = vadd.f32 %v1023, %v1056
        %v1085 = vadd.f32 %v1024, %v1057
        %v1086 = vadd.f32 %v1025, %v1058
        %v1087 = vadd.f32 %v1026, %v1059
        %v1088 = vadd.f32 %v1027, %v1060
        %v1089 = vadd.f32 %v1028, %v1061
        %v1090 = vadd.f32 %v1029, %v1062
        %v1091 = vadd.f32 %v1030, %v1063
        %v1092 = vadd.f32 %v1031, %v1064
        %v1093 = vadd.f32 %v1032, %v1065
        %v1094 = vadd.f32 %v1033, %v1066
        %v1095 = vadd.f32 %v1034, %v1067
        %v1096 = vadd.f32 %v1035, %v1068
        %v1097 = vadd.f32 %v1036, %v1069
        %v1098 = vadd.f32 %v1037, %v1070
        %v1099 = vadd.f32 %v1038, %v1071
        %v1100 = vadd.f32 %v1039, %v1072
        %v1101 = vadd.f32 %v1040, %v1073
        %v1102 = vadd.f32 %v1041, %v1074
        %v1103 = vadd.f32 %v1042, %v1075
        %v1104 = vadd.f32 %v1043, %v1076
        %v1105 = vadd.f32 %v1044, %v1077
        %v1106 = vadd.f32 %v1045, %v1078
        %v1107 = vld [vmem:[%s923 + $0x1] sm:$0x1]
        %v1108 = vlaneseq
        %v1109 = vshrl.u32 %v1108, 7
        %v1110 = vsub.s32 0, %v1109
        %v1111 = vrot.slane %v1107, %v1110
        %v1112 = vmul.f32 %v698, %v1111
        %v1113 = vmul.f32 %v699, %v1111
        %v1114 = vmul.f32 %v700, %v1111
        %v1115 = vmul.f32 %v701, %v1111
        %v1116 = vmul.f32 %v702, %v1111
        %v1117 = vmul.f32 %v703, %v1111
        %v1118 = vmul.f32 %v704, %v1111
        %v1119 = vmul.f32 %v705, %v1111
        %v1120 = vmul.f32 %v706, %v1111
        %v1121 = vmul.f32 %v707, %v1111
        %v1122 = vmul.f32 %v708, %v1111
        %v1123 = vmul.f32 %v709, %v1111
        %v1124 = vmul.f32 %v710, %v1111
        %v1125 = vmul.f32 %v711, %v1111
        %v1126 = vmul.f32 %v712, %v1111
        %v1127 = vmul.f32 %v713, %v1111
        %v1128 = vmul.f32 %v714, %v1111
        %v1129 = vmul.f32 %v715, %v1111
        %v1130 = vmul.f32 %v716, %v1111
        %v1131 = vmul.f32 %v717, %v1111
        %v1132 = vmul.f32 %v718, %v1111
        %v1133 = vmul.f32 %v719, %v1111
        %v1134 = vmul.f32 %v720, %v1111
        %v1135 = vmul.f32 %v721, %v1111
        %v1136 = vmul.f32 %v722, %v1111
        %v1137 = vmul.f32 %v723, %v1111
        %v1138 = vmul.f32 %v724, %v1111
        %v1139 = vmul.f32 %v725, %v1111
        %v1140 = vadd.f32 %v1079, %v1112
        %v1141 = vadd.f32 %v1080, %v1113
        %v1142 = vadd.f32 %v1081, %v1114
        %v1143 = vadd.f32 %v1082, %v1115
        %v1144 = vadd.f32 %v1083, %v1116
        %v1145 = vadd.f32 %v1084, %v1117
        %v1146 = vadd.f32 %v1085, %v1118
        %v1147 = vadd.f32 %v1086, %v1119
        %v1148 = vadd.f32 %v1087, %v1120
        %v1149 = vadd.f32 %v1088, %v1121
        %v1150 = vadd.f32 %v1089, %v1122
        %v1151 = vadd.f32 %v1090, %v1123
        %v1152 = vadd.f32 %v1091, %v1124
        %v1153 = vadd.f32 %v1092, %v1125
        %v1154 = vadd.f32 %v1093, %v1126
        %v1155 = vadd.f32 %v1094, %v1127
        %v1156 = vadd.f32 %v1095, %v1128
        %v1157 = vadd.f32 %v1096, %v1129
        %v1158 = vadd.f32 %v1097, %v1130
        %v1159 = vadd.f32 %v1098, %v1131
        %v1160 = vadd.f32 %v1099, %v1132
        %v1161 = vadd.f32 %v1100, %v1133
        %v1162 = vadd.f32 %v1101, %v1134
        %v1163 = vadd.f32 %v1102, %v1135
        %v1164 = vadd.f32 %v1103, %v1136
        %v1165 = vadd.f32 %v1104, %v1137
        %v1166 = vadd.f32 %v1105, %v1138
        %v1167 = vadd.f32 %v1106, %v1139
        %v1168 = vrot.slane %v694, 1
        %v1169 = vrot.slane %v696, 1
        %v1170 = vrot.slane %v698, 1
        %v1171 = vrot.slane %v700, 1
        %v1172 = vrot.slane %v702, 1
        %v1173 = vrot.slane %v704, 1
        %v1174 = vrot.slane %v706, 1
        %v1175 = vrot.slane %v708, 1
        %v1176 = vrot.slane %v710, 1
        %v1177 = vrot.slane %v712, 1
        %v1178 = vrot.slane %v714, 1
        %v1179 = vrot.slane %v716, 1
        %v1180 = vrot.slane %v718, 1
        %v1181 = vrot.slane %v720, 1
        %v1182 = vrot.slane %v722, 1
        %v1183 = vrot.slane %v724, 1
        %v1184 = vrot.slane %v695, 1
        %v1185 = vrot.slane %v697, 1
        %v1186 = vrot.slane %v699, 1
        %v1187 = vrot.slane %v701, 1
        %v1188 = vrot.slane %v703, 1
        %v1189 = vrot.slane %v705, 1
        %v1190 = vrot.slane %v707, 1
        %v1191 = vrot.slane %v709, 1
        %v1192 = vrot.slane %v711, 1
        %v1193 = vrot.slane %v713, 1
        %v1194 = vrot.slane %v715, 1
        %v1195 = vrot.slane %v717, 1
        %v1196 = vrot.slane %v719, 1
        %v1197 = vrot.slane %v721, 1
        %v1198 = vrot.slane %v723, 1
        %v1199 = vrot.slane %v725, 1
        %vm1200 = vcmp.lt.s32.totalorder %v760, 7
        %v1201 = vsel %vm1200, %v1168, %v1184
        %v1202 = vsel %vm1200, %v1169, %v1185
        %v1203 = vsel %vm1200, %v1170, %v1186
        %v1204 = vsel %vm1200, %v1171, %v1187
        %v1205 = vsel %vm1200, %v1172, %v1188
        %v1206 = vsel %vm1200, %v1173, %v1189
        %v1207 = vsel %vm1200, %v1174, %v1190
        %v1208 = vsel %vm1200, %v1175, %v1191
        %v1209 = vsel %vm1200, %v1176, %v1192
        %v1210 = vsel %vm1200, %v1177, %v1193
        %v1211 = vsel %vm1200, %v1178, %v1194
        %v1212 = vsel %vm1200, %v1179, %v1195
        %v1213 = vsel %vm1200, %v1180, %v1196
        %v1214 = vsel %vm1200, %v1181, %v1197
        %v1215 = vsel %vm1200, %v1182, %v1198
        %v1216 = vsel %vm1200, %v1183, %v1199
        %v1217 = vsel %vm1200, %v1184, %v1168
        %v1218 = vsel %vm1200, %v1185, %v1169
        %v1219 = vsel %vm1200, %v1186, %v1170
        %v1220 = vsel %vm1200, %v1187, %v1171
        %v1221 = vsel %vm1200, %v1188, %v1172
        %v1222 = vsel %vm1200, %v1189, %v1173
        %v1223 = vsel %vm1200, %v1190, %v1174
        %v1224 = vsel %vm1200, %v1191, %v1175
        %v1225 = vsel %vm1200, %v1192, %v1176
        %v1226 = vsel %vm1200, %v1193, %v1177
        %v1227 = vsel %vm1200, %v1194, %v1178
        %v1228 = vsel %vm1200, %v1195, %v1179
        %v1229 = vsel %vm1200, %v1196, %v1180
        %v1230 = vsel %vm1200, %v1197, %v1181
        %v1231 = vsel %vm1200, %v1198, %v1182
        %v1232 = vsel %vm1200, %v1199, %v1183
        %v1233 = vld [vmem:[#allocation9 + $0x2] sm:$0x1]
        %v1234 = vlaneseq
        %v1235 = vshrl.u32 %v1234, 7
        %v1236 = vsub.s32 0, %v1235
        %v1237 = vrot.slane %v1233, %v1236
        %v1238 = vmul.f32 %v1201, %v1237
        %v1239 = vmul.f32 %v1217, %v1237
        %v1240 = vmul.f32 %v1202, %v1237
        %v1241 = vmul.f32 %v1218, %v1237
        %v1242 = vmul.f32 %v1203, %v1237
        %v1243 = vmul.f32 %v1219, %v1237
        %v1244 = vmul.f32 %v1204, %v1237
        %v1245 = vmul.f32 %v1220, %v1237
        %v1246 = vmul.f32 %v1205, %v1237
        %v1247 = vmul.f32 %v1221, %v1237
        %v1248 = vmul.f32 %v1206, %v1237
        %v1249 = vmul.f32 %v1222, %v1237
        %v1250 = vmul.f32 %v1207, %v1237
        %v1251 = vmul.f32 %v1223, %v1237
        %v1252 = vmul.f32 %v1208, %v1237
        %v1253 = vmul.f32 %v1224, %v1237
        %v1254 = vmul.f32 %v1209, %v1237
        %v1255 = vmul.f32 %v1225, %v1237
        %v1256 = vmul.f32 %v1210, %v1237
        %v1257 = vmul.f32 %v1226, %v1237
        %v1258 = vmul.f32 %v1211, %v1237
        %v1259 = vmul.f32 %v1227, %v1237
        %v1260 = vmul.f32 %v1212, %v1237
        %v1261 = vmul.f32 %v1228, %v1237
        %v1262 = vmul.f32 %v1213, %v1237
        %v1263 = vmul.f32 %v1229, %v1237
        %v1264 = vmul.f32 %v1214, %v1237
        %v1265 = vmul.f32 %v1230, %v1237
        %v1266 = vadd.f32 %v1140, %v1238
        %v1267 = vadd.f32 %v1141, %v1239
        %v1268 = vadd.f32 %v1142, %v1240
        %v1269 = vadd.f32 %v1143, %v1241
        %v1270 = vadd.f32 %v1144, %v1242
        %v1271 = vadd.f32 %v1145, %v1243
        %v1272 = vadd.f32 %v1146, %v1244
        %v1273 = vadd.f32 %v1147, %v1245
        %v1274 = vadd.f32 %v1148, %v1246
        %v1275 = vadd.f32 %v1149, %v1247
        %v1276 = vadd.f32 %v1150, %v1248
        %v1277 = vadd.f32 %v1151, %v1249
        %v1278 = vadd.f32 %v1152, %v1250
        %v1279 = vadd.f32 %v1153, %v1251
        %v1280 = vadd.f32 %v1154, %v1252
        %v1281 = vadd.f32 %v1155, %v1253
        %v1282 = vadd.f32 %v1156, %v1254
        %v1283 = vadd.f32 %v1157, %v1255
        %v1284 = vadd.f32 %v1158, %v1256
        %v1285 = vadd.f32 %v1159, %v1257
        %v1286 = vadd.f32 %v1160, %v1258
        %v1287 = vadd.f32 %v1161, %v1259
        %v1288 = vadd.f32 %v1162, %v1260
        %v1289 = vadd.f32 %v1163, %v1261
        %v1290 = vadd.f32 %v1164, %v1262
        %v1291 = vadd.f32 %v1165, %v1263
        %v1292 = vadd.f32 %v1166, %v1264
        %v1293 = vadd.f32 %v1167, %v1265
        %v1294 = vld [vmem:[%s861 + $0x2] sm:$0x1]
        %v1295 = vlaneseq
        %v1296 = vshrl.u32 %v1295, 7
        %v1297 = vsub.s32 0, %v1296
        %v1298 = vrot.slane %v1294, %v1297
        %v1299 = vmul.f32 %v1202, %v1298
        %v1300 = vmul.f32 %v1218, %v1298
        %v1301 = vmul.f32 %v1203, %v1298
        %v1302 = vmul.f32 %v1219, %v1298
        %v1303 = vmul.f32 %v1204, %v1298
        %v1304 = vmul.f32 %v1220, %v1298
        %v1305 = vmul.f32 %v1205, %v1298
        %v1306 = vmul.f32 %v1221, %v1298
        %v1307 = vmul.f32 %v1206, %v1298
        %v1308 = vmul.f32 %v1222, %v1298
        %v1309 = vmul.f32 %v1207, %v1298
        %v1310 = vmul.f32 %v1223, %v1298
        %v1311 = vmul.f32 %v1208, %v1298
        %v1312 = vmul.f32 %v1224, %v1298
        %v1313 = vmul.f32 %v1209, %v1298
        %v1314 = vmul.f32 %v1225, %v1298
        %v1315 = vmul.f32 %v1210, %v1298
        %v1316 = vmul.f32 %v1226, %v1298
        %v1317 = vmul.f32 %v1211, %v1298
        %v1318 = vmul.f32 %v1227, %v1298
        %v1319 = vmul.f32 %v1212, %v1298
        %v1320 = vmul.f32 %v1228, %v1298
        %v1321 = vmul.f32 %v1213, %v1298
        %v1322 = vmul.f32 %v1229, %v1298
        %v1323 = vmul.f32 %v1214, %v1298
        %v1324 = vmul.f32 %v1230, %v1298
        %v1325 = vmul.f32 %v1215, %v1298
        %v1326 = vmul.f32 %v1231, %v1298
        %v1327 = vadd.f32 %v1266, %v1299
        %v1328 = vadd.f32 %v1267, %v1300
        %v1329 = vadd.f32 %v1268, %v1301
        %v1330 = vadd.f32 %v1269, %v1302
        %v1331 = vadd.f32 %v1270, %v1303
        %v1332 = vadd.f32 %v1271, %v1304
        %v1333 = vadd.f32 %v1272, %v1305
        %v1334 = vadd.f32 %v1273, %v1306
        %v1335 = vadd.f32 %v1274, %v1307
        %v1336 = vadd.f32 %v1275, %v1308
        %v1337 = vadd.f32 %v1276, %v1309
        %v1338 = vadd.f32 %v1277, %v1310
        %v1339 = vadd.f32 %v1278, %v1311
        %v1340 = vadd.f32 %v1279, %v1312
        %v1341 = vadd.f32 %v1280, %v1313
        %v1342 = vadd.f32 %v1281, %v1314
        %v1343 = vadd.f32 %v1282, %v1315
        %v1344 = vadd.f32 %v1283, %v1316
        %v1345 = vadd.f32 %v1284, %v1317
        %v1346 = vadd.f32 %v1285, %v1318
        %v1347 = vadd.f32 %v1286, %v1319
        %v1348 = vadd.f32 %v1287, %v1320
        %v1349 = vadd.f32 %v1288, %v1321
        %v1350 = vadd.f32 %v1289, %v1322
        %v1351 = vadd.f32 %v1290, %v1323
        %v1352 = vadd.f32 %v1291, %v1324
        %v1353 = vadd.f32 %v1292, %v1325
        %v1354 = vadd.f32 %v1293, %v1326
        %v1355 = vld [vmem:[%s923 + $0x2] sm:$0x1]
        %v1356 = vlaneseq
        %v1357 = vshrl.u32 %v1356, 7
        %v1358 = vsub.s32 0, %v1357
        %v1359 = vrot.slane %v1355, %v1358
        %v1360 = vmul.f32 %v1203, %v1359
        %v1361 = vmul.f32 %v1219, %v1359
        %v1362 = vmul.f32 %v1204, %v1359
        %v1363 = vmul.f32 %v1220, %v1359
        %v1364 = vmul.f32 %v1205, %v1359
        %v1365 = vmul.f32 %v1221, %v1359
        %v1366 = vmul.f32 %v1206, %v1359
        %v1367 = vmul.f32 %v1222, %v1359
        %v1368 = vmul.f32 %v1207, %v1359
        %v1369 = vmul.f32 %v1223, %v1359
        %v1370 = vmul.f32 %v1208, %v1359
        %v1371 = vmul.f32 %v1224, %v1359
        %v1372 = vmul.f32 %v1209, %v1359
        %v1373 = vmul.f32 %v1225, %v1359
        %v1374 = vmul.f32 %v1210, %v1359
        %v1375 = vmul.f32 %v1226, %v1359
        %v1376 = vmul.f32 %v1211, %v1359
        %v1377 = vmul.f32 %v1227, %v1359
        %v1378 = vmul.f32 %v1212, %v1359
        %v1379 = vmul.f32 %v1228, %v1359
        %v1380 = vmul.f32 %v1213, %v1359
        %v1381 = vmul.f32 %v1229, %v1359
        %v1382 = vmul.f32 %v1214, %v1359
        %v1383 = vmul.f32 %v1230, %v1359
        %v1384 = vmul.f32 %v1215, %v1359
        %v1385 = vmul.f32 %v1231, %v1359
        %v1386 = vmul.f32 %v1216, %v1359
        %v1387 = vmul.f32 %v1232, %v1359
        %v1388 = vadd.f32 %v1327, %v1360
        %v1389 = vadd.f32 %v1328, %v1361
        %v1390 = vadd.f32 %v1329, %v1362
        %v1391 = vadd.f32 %v1330, %v1363
        %v1392 = vadd.f32 %v1331, %v1364
        %v1393 = vadd.f32 %v1332, %v1365
        %v1394 = vadd.f32 %v1333, %v1366
        %v1395 = vadd.f32 %v1334, %v1367
        %v1396 = vadd.f32 %v1335, %v1368
        %v1397 = vadd.f32 %v1336, %v1369
        %v1398 = vadd.f32 %v1337, %v1370
        %v1399 = vadd.f32 %v1338, %v1371
        %v1400 = vadd.f32 %v1339, %v1372
        %v1401 = vadd.f32 %v1340, %v1373
        %v1402 = vadd.f32 %v1341, %v1374
        %v1403 = vadd.f32 %v1342, %v1375
        %v1404 = vadd.f32 %v1343, %v1376
        %v1405 = vadd.f32 %v1344, %v1377
        %v1406 = vadd.f32 %v1345, %v1378
        %v1407 = vadd.f32 %v1346, %v1379
        %v1408 = vadd.f32 %v1347, %v1380
        %v1409 = vadd.f32 %v1348, %v1381
        %v1410 = vadd.f32 %v1349, %v1382
        %v1411 = vadd.f32 %v1350, %v1383
        %v1412 = vadd.f32 %v1351, %v1384
        %v1413 = vadd.f32 %v1352, %v1385
        %v1414 = vadd.f32 %v1353, %v1386
        %v1415 = vadd.f32 %v1354, %v1387
        %v1416 = vld [vmem:[%s5] sm:$0x1]
        %v1417 = vld [vmem:[%s6] sm:$0x1]
        %v1418 = vadd.s32 %v760, 8
        %vm1419 = vcmp.eq.s32.totalorder %v760, 0
        %vm1420 = vcmp.eq.s32.totalorder %v1418, 0
        %vm1421 = vcmp.eq.s32.totalorder %v760, 15
        %vm1422 = vcmp.eq.s32.totalorder %v1418, 15
        %vm1423 = vmor %vm1419, %vm1421
        %vm1424 = vmor %vm1420, %vm1422
        %v1426 = vlaneseq
        %v1427 = vshrl.u32 %v1426, 7
        %v1428 = vsub.s32 0, %v1427
        %v1429 = vrot.slane %v1416, %v1428
        %v1431 = vmul.f32 %v1388, %v1429
        %v1432 = vmul.f32 %v1389, %v1429
        %v1433 = vmul.f32 %v1390, %v1429
        %v1434 = vmul.f32 %v1391, %v1429
        %v1435 = vmul.f32 %v1392, %v1429
        %v1436 = vmul.f32 %v1393, %v1429
        %v1437 = vmul.f32 %v1394, %v1429
        %v1438 = vmul.f32 %v1395, %v1429
        %v1439 = vmul.f32 %v1396, %v1429
        %v1440 = vmul.f32 %v1397, %v1429
        %v1441 = vmul.f32 %v1398, %v1429
        %v1442 = vmul.f32 %v1399, %v1429
        %v1443 = vmul.f32 %v1400, %v1429
        %v1444 = vmul.f32 %v1401, %v1429
        %v1445 = vmul.f32 %v1402, %v1429
        %v1446 = vmul.f32 %v1403, %v1429
        %v1447 = vmul.f32 %v1404, %v1429
        %v1448 = vmul.f32 %v1405, %v1429
        %v1449 = vmul.f32 %v1406, %v1429
        %v1450 = vmul.f32 %v1407, %v1429
        %v1451 = vmul.f32 %v1408, %v1429
        %v1452 = vmul.f32 %v1409, %v1429
        %v1453 = vmul.f32 %v1410, %v1429
        %v1454 = vmul.f32 %v1411, %v1429
        %v1455 = vmul.f32 %v1412, %v1429
        %v1456 = vmul.f32 %v1413, %v1429
        %v1457 = vmul.f32 %v1414, %v1429
        %v1458 = vmul.f32 %v1415, %v1429
        %v1460 = vlaneseq
        %v1461 = vshrl.u32 %v1460, 7
        %v1462 = vsub.s32 0, %v1461
        %v1463 = vrot.slane %v1417, %v1462
        %v1465 = vadd.f32 %v1431, %v1463
        %v1466 = vadd.f32 %v1432, %v1463
        %v1467 = vadd.f32 %v1433, %v1463
        %v1468 = vadd.f32 %v1434, %v1463
        %v1469 = vadd.f32 %v1435, %v1463
        %v1470 = vadd.f32 %v1436, %v1463
        %v1471 = vadd.f32 %v1437, %v1463
        %v1472 = vadd.f32 %v1438, %v1463
        %v1473 = vadd.f32 %v1439, %v1463
        %v1474 = vadd.f32 %v1440, %v1463
        %v1475 = vadd.f32 %v1441, %v1463
        %v1476 = vadd.f32 %v1442, %v1463
        %v1477 = vadd.f32 %v1443, %v1463
        %v1478 = vadd.f32 %v1444, %v1463
        %v1479 = vadd.f32 %v1445, %v1463
        %v1480 = vadd.f32 %v1446, %v1463
        %v1481 = vadd.f32 %v1447, %v1463
        %v1482 = vadd.f32 %v1448, %v1463
        %v1483 = vadd.f32 %v1449, %v1463
        %v1484 = vadd.f32 %v1450, %v1463
        %v1485 = vadd.f32 %v1451, %v1463
        %v1486 = vadd.f32 %v1452, %v1463
        %v1487 = vadd.f32 %v1453, %v1463
        %v1488 = vadd.f32 %v1454, %v1463
        %v1489 = vadd.f32 %v1455, %v1463
        %v1490 = vadd.f32 %v1456, %v1463
        %v1491 = vadd.f32 %v1457, %v1463
        %v1492 = vadd.f32 %v1458, %v1463
        %v1493 = vsel %vm1423, %v1463, %v1465
        %v1494 = vsel %vm1424, %v1463, %v1466
        %v1495 = vsel %vm1423, %v1463, %v1467
        %v1496 = vsel %vm1424, %v1463, %v1468
        %v1497 = vsel %vm1423, %v1463, %v1469
        %v1498 = vsel %vm1424, %v1463, %v1470
        %v1499 = vsel %vm1423, %v1463, %v1471
        %v1500 = vsel %vm1424, %v1463, %v1472
        %v1501 = vsel %vm1423, %v1463, %v1473
        %v1502 = vsel %vm1424, %v1463, %v1474
        %v1503 = vsel %vm1423, %v1463, %v1475
        %v1504 = vsel %vm1424, %v1463, %v1476
        %v1505 = vsel %vm1423, %v1463, %v1477
        %v1506 = vsel %vm1424, %v1463, %v1478
        %v1507 = vsel %vm1423, %v1463, %v1479
        %v1508 = vsel %vm1424, %v1463, %v1480
        %v1509 = vsel %vm1423, %v1463, %v1481
        %v1510 = vsel %vm1424, %v1463, %v1482
        %v1511 = vsel %vm1423, %v1463, %v1483
        %v1512 = vsel %vm1424, %v1463, %v1484
        %v1513 = vsel %vm1423, %v1463, %v1485
        %v1514 = vsel %vm1424, %v1463, %v1486
        %v1515 = vsel %vm1423, %v1463, %v1487
        %v1516 = vsel %vm1424, %v1463, %v1488
        %v1517 = vsel %vm1423, %v1463, %v1489
        %v1518 = vsel %vm1424, %v1463, %v1490
        %v1519 = vsel %vm1423, %v1463, %v1491
        %v1520 = vsel %vm1424, %v1463, %v1492
        %s1521 = scalar_lea.vmem %s362, 16 [#allocation10]
        %1522 = vst [vmem:[%s1521] sm:$0xff] %v1493
        %1523 = vst [vmem:[%s1521 + $0x8] sm:$0xff] %v1494
        %1524 = vst [vmem:[%s1521 + $0x10] sm:$0xff] %v1495
        %1525 = vst [vmem:[%s1521 + $0x18] sm:$0xff] %v1496
        %1526 = vst [vmem:[%s1521 + $0x20] sm:$0xff] %v1497
        %1527 = vst [vmem:[%s1521 + $0x28] sm:$0xff] %v1498
        %1528 = vst [vmem:[%s1521 + $0x30] sm:$0xff] %v1499
        %1529 = vst [vmem:[%s1521 + $0x38] sm:$0xff] %v1500
        %1530 = vst [vmem:[%s1521 + $0x40] sm:$0xff] %v1501
        %1531 = vst [vmem:[%s1521 + $0x48] sm:$0xff] %v1502
        %1532 = vst [vmem:[%s1521 + $0x50] sm:$0xff] %v1503
        %1533 = vst [vmem:[%s1521 + $0x58] sm:$0xff] %v1504
        %1534 = vst [vmem:[%s1521 + $0x60] sm:$0xff] %v1505
        %1535 = vst [vmem:[%s1521 + $0x68] sm:$0xff] %v1506
        %1536 = vst [vmem:[%s1521 + $0x70] sm:$0xff] %v1507
        %1537 = vst [vmem:[%s1521 + $0x78] sm:$0xff] %v1508
        %1538 = vst [vmem:[%s1521 + $0x80] sm:$0xff] %v1509
        %1539 = vst [vmem:[%s1521 + $0x88] sm:$0xff] %v1510
        %1540 = vst [vmem:[%s1521 + $0x90] sm:$0xff] %v1511
        %1541 = vst [vmem:[%s1521 + $0x98] sm:$0xff] %v1512
        %1542 = vst [vmem:[%s1521 + $0xa0] sm:$0xff] %v1513
        %1543 = vst [vmem:[%s1521 + $0xa8] sm:$0xff] %v1514
        %1544 = vst [vmem:[%s1521 + $0xb0] sm:$0xff] %v1515
        %1545 = vst [vmem:[%s1521 + $0xb8] sm:$0xff] %v1516
        %1546 = vst [vmem:[%s1521 + $0xc0] sm:$0xff] %v1517
        %1547 = vst [vmem:[%s1521 + $0xc8] sm:$0xff] %v1518
        %1548 = vst [vmem:[%s1521 + $0xd0] sm:$0xff] %v1519
        %1549 = vst [vmem:[%s1521 + $0xd8] sm:$0xff] %v1520
        %1550 = vst [vmem:[%s362] sm:$0xff] %v1463
        %1551 = vst [vmem:[%s362 + $0x8] sm:$0xff] %v1463
        %s1552 = scalar_lea.vmem %s362, 240 [#allocation10]
        %1553 = vst [vmem:[%s1552] sm:$0xff] %v1463
        %1554 = vst [vmem:[%s1552 + $0x8] sm:$0xff] %v1463
        %s1555 = sand.u32 %s193, 1
        %s1556 = scalar_lea.sflag [#allocation4], %s1555
        %s1557 = sand.u32 %s193, 1
        %s1558 = smul.addr %s1557, 256
        %s1559 = scalar_lea.vmem [#allocation10], %s1558
        // Predicated region
        $region65: #{tpu_custom_call.1} parent=47 // pred_check
          %p1560 = pneg %p203
        $region66: #{tpu_custom_call.1} parent=47 // pred_check_branch
          %1562 = sbr.rel (%p1560) target = $region68
        $region67: #{tpu_custom_call.1} parent=47 // pred_region
          %s1564 = ssub.s32 4096, 4096
          %1565 = vsyncadd %s1556, %s1564
          %s1566 = smul.addr %s28, 32
          %s1567 = smul.addr %s1566, 128
          %s1568 = scalar_lea.hbm %s7, %s1567
          %s1569 = sshll.u32 %s1559, 4
          %s1570 = int_to_ptr.vmem [resolvable:$true] %s1569
          %1575 = dma.vmem_to_hbm [thread:$0]  %s1570, 4096, %s1568, %s1556, 128, 128, 8
        $region68: #{tpu_custom_call.1} parent=47 // pred_fallthru
          _
      $region48: #{tpu_custom_call.1} parent=5 // pred_fallthru
        _
      %p1576 = scmp.le.s32.totalorder 2, %s23
      // Predicated region
      $region69: #{tpu_custom_call.1} parent=5 // pred_check
        %p1577 = pneg %p1576
      $region70: #{tpu_custom_call.1} parent=5 // pred_check_branch
        %1579 = sbr.rel (%p1577) target = $region72
      $region71: #{tpu_custom_call.1} parent=5 // pred_region
        %s1580 = ssub.s32 %s23, 2
        // Predicated region
        $region73: #{tpu_custom_call.1} parent=71 // pred_check
          %p1581 = pneg %p209
        $region74: #{tpu_custom_call.1} parent=71 // pred_check_branch
          %1583 = sbr.rel (%p1581) target = $region76
        $region75: #{tpu_custom_call.1} parent=71 // pred_region
          %s1584 = sand.u32 %s194, 1
          %s1585 = scalar_lea.sflag [#allocation4], %s1584
          %s1586 = sand.u32 %s194, 1
          %s1587 = smul.addr %s1586, 256
          %s1588 = scalar_lea.vmem [#allocation10], %s1587
          %1589 = dma.done %s1585, 4096
        $region76: #{tpu_custom_call.1} parent=71 // pred_fallthru
          _
      $region72: #{tpu_custom_call.1} parent=5 // pred_fallthru
        _
    $region6: #{tpu_custom_call.1} parent=1 // loop_footer
      %s27 = sadd.s32 1, %s23
    $region7: #{tpu_custom_call.1} parent=1 // loop_footer_branch
      %22 = sbr.rel target = $region3
    $region8: #{tpu_custom_call.1} parent=1 // loop_exit
      _
    %1590 = vsyncpa [#allocation3], 1
    %s1591 = scalar_lea.sflag [#allocation3], 1
    %1592 = vsyncpa %s1591, 1
    %1593 = vsyncpa [#allocation8], 1
    %s1594 = scalar_lea.sflag [#allocation8], 1
    %1595 = vsyncpa %s1594, 1
    %1596 = vsyncpa [#allocation4], 1
    %s1597 = scalar_lea.sflag [#allocation4], 1
    %1598 = vsyncpa %s1597, 1
    %1599 = vsyncpa [#allocation5], 1
    %s1600 = scalar_lea.sflag [#allocation5], 1
    %1601 = vsyncpa %s1600, 1

</llo_original>
